<compile_context>
chip_gen: v6e
topology: v6e:2x2x1
jax: 0.10.0
libtpu: 0.0.40
codegen_flags: <defaults>
</compile_context>

<pallas_src>
import jax
import jax.numpy as jnp
from jax.experimental import pallas as pl
from jax.experimental.pallas import tpu as pltpu

KSIZE = 5
PAD = (KSIZE - 1) // 2  # 2

# VMEM sizing (re-derive per generation if you change these):
#   v5e: 128 MiB physical, 16 MiB scoped default
#   v6e: 128 MiB physical, 32 MiB scoped default
#   v7x:  64 MiB physical, 32 MiB scoped default
# A 16 MiB block budget + explicit 32 MiB limit is safe on all three.
_VMEM_BLOCK_BUDGET = 16 * 1024 * 1024
_VMEM_LIMIT_BYTES = 32 * 1024 * 1024


def _filter_high_kernel(x_ref, o_ref, xp_ref, ot_ref):
    # x_ref : (1, B, H*W)  lane-dense flat input planes
    # o_ref : (1, B, H*W)  lane-dense flat output planes
    # xp_ref: (B, H+4, W+4) zero-padded 2-D working copy (VMEM scratch)
    # ot_ref: (B, H, W)     2-D staging of the result    (VMEM scratch)
    B, Hp, Wp = xp_ref.shape
    H, W = Hp - 2 * PAD, Wp - 2 * PAD
    inv = 0.5 / float(KSIZE * KSIZE)  # fused 0.5 * (1/25); include_pad -> /25 always

    # (1) Build the zero halo + interior in VMEM (no wrapper-side padding).
    #     Re-zero every step: the scratch persists across grid steps and under
    #     a "parallel" grid axis a second core starts at program_id != 0.
    xp_ref[...] = jnp.zeros_like(xp_ref)
    for i in range(H):  # un-flatten one image row per (static) iteration
        xp_ref[:, PAD + i, PAD:PAD + W] = x_ref[0, :, pl.ds(i * W, W)]

    # (2) Separable 5x5 box sum.
    #     Horizontal pass: 5 lane-shifted taps, 4 adds.
    rowsum = xp_ref[:, :, 0:W]
    for dj in range(1, KSIZE):
        rowsum = rowsum + xp_ref[:, :, dj:dj + W]
    #     Vertical pass: 5 sublane-shifted taps, 4 adds (pad rows are zero).
    acc = rowsum[:, 0:H, :]
    for di in range(1, KSIZE):
        acc = acc + rowsum[:, di:di + H, :]

    # (3) Fused high-pass: 0.5 + 0.5*img - (0.5/25)*boxsum   (normalize=True)
    center = xp_ref[:, PAD:PAD + H, PAD:PAD + W]
    ot_ref[...] = 0.5 + 0.5 * center - inv * acc

    # (4) Re-flatten into the lane-dense (B, H*W) output slab: one contiguous
    #     block per grid step -> dense output DMA back to HBM.
    for i in range(H):
        o_ref[0, :, pl.ds(i * W, W)] = ot_ref[:, i, :]


def _vmem_bytes_for_block(b, H, W):
    """Estimated VMEM footprint for a block of `b` planes (incl. double buffers)."""
    Hp, Wp = H + 2 * PAD, W + 2 * PAD

    def tile_pad(r, c):  # (8,128) tiling of the last two dims
        return ((r + 7) // 8 * 8) * ((c + 127) // 128 * 128)

    hw_block = tile_pad(b, H * W) * 4           # one (b, H*W) f32 block
    io = 2 * 2 * hw_block                       # in + out, double-buffered
    scratch = (tile_pad(Hp, Wp) + tile_pad(H, W)) * b * 4
    return io + scratch


def _pick_block_planes(P, H, W, budget):
    """Largest divisor of P that fits the VMEM budget and keeps >=2 grid steps."""
    want_steps = 2 if P >= 2 else 1  # >=2 parallel steps feeds both TCs on v7x
    best = 1
    for b in range(1, P + 1):
        if P % b:
            continue
        if P // b < want_steps:
            break
        if _vmem_bytes_for_block(b, H, W) <= budget:
            best = b
    return best


def filter_high(img):
    """img: (N, C, H, W) float32 -> (N, C, H, W) float32 high-pass result."""
    N, C, H, W = img.shape
    P = N * C
    HW = H * W
    Hp, Wp = H + 2 * PAD, W + 2 * PAD

    B = _pick_block_planes(P, H, W, _VMEM_BLOCK_BUDGET)
    G = P // B

    # Free, copy-less reshape: (N,C,H,W) -> (G, B, H*W) lane-dense slabs.
    x = img.astype(jnp.float32).reshape(G, B, HW)

    out = pl.pallas_call(
        _filter_high_kernel,
        out_shape=jax.ShapeDtypeStruct((G, B, HW), jnp.float32),
        grid_spec=pltpu.PrefetchScalarGridSpec(
            num_scalar_prefetch=0,
            grid=(G,),
            in_specs=[pl.BlockSpec((1, B, HW), lambda g: (g, 0, 0))],
            out_specs=pl.BlockSpec((1, B, HW), lambda g: (g, 0, 0)),
            scratch_shapes=[
                pltpu.VMEM((B, Hp, Wp), jnp.float32),  # padded planes
                pltpu.VMEM((B, H, W), jnp.float32),    # 2-D result staging
            ],
        ),
        compiler_params=pltpu.CompilerParams(
            dimension_semantics=("parallel",),
            vmem_limit_bytes=_VMEM_LIMIT_BYTES,
        ),
    )(x)
    return out.reshape(N, C, H, W)


def _filter_high_ref(img):
    """Pure-JAX reference (AvgPool2d count_include_pad=True, then high-pass)."""
    N, C, H, W = img.shape
    x = img.reshape(N * C, H, W).astype(jnp.float32)
    xpad = jnp.pad(x, ((0, 0), (PAD, PAD), (PAD, PAD)))
    acc = jnp.zeros_like(x)
    for di in range(KSIZE):
        for dj in range(KSIZE):
            acc = acc + xpad[:, di:di + H, dj:dj + W]
    return (0.5 + 0.5 * (x - acc / (KSIZE * KSIZE))).reshape(N, C, H, W)


if __name__ == "__main__":
    key = jax.random.PRNGKey(0)
    # AvgPool path is channel-agnostic; C=3 matches the module's image inputs.
    x = jax.random.uniform(key, (2, 3, 16, 16), dtype=jnp.float32)

    y = jax.jit(filter_high)(x)
    y = jax.block_until_ready(y)

    y_ref = _filter_high_ref(x)
    assert y.shape == (2, 3, 16, 16)
    assert jnp.allclose(y, y_ref, atol=1e-5, rtol=1e-5)

    print("KERNEL_OK")
</pallas_src>

<mosaic_0001>
module attributes {stable_mosaic.version = 11 : i64} {
  func.func @_filter_high_kernel(%arg0: i32, %arg1: memref<1x3x256xf32, #tpu.memory_space<vmem>>, %arg2: memref<1x3x256xf32, #tpu.memory_space<vmem>>, %arg3: memref<3x20x20xf32, #tpu.memory_space<vmem>>, %arg4: memref<3x16x16xf32, #tpu.memory_space<vmem>>) attributes {dimension_semantics = [#tpu.dimension_semantics<parallel>], iteration_bounds = array<i64: 2>, scalar_prefetch = 0 : i64, scratch_operands = 2 : i64, tpu.core_type = #tpu.core_type<tc>, window_params = [{transform_indices = @transform_0, window_bounds = array<i64: 1, 3, 256>}, {transform_indices = @transform_1, window_bounds = array<i64: 1, 3, 256>}]} {
    %cst = arith.constant 0.000000e+00 : f32
    %0 = vector.broadcast %cst : f32 to vector<3x20x20xf32>
    %c0 = arith.constant 0 : index
    %c0_0 = arith.constant 0 : index
    %c0_1 = arith.constant 0 : index
    %1 = vector.load %arg3[%c0, %c0_0, %c0_1] : memref<3x20x20xf32, #tpu.memory_space<vmem>>, vector<3x20x20xf32>
    tpu.vector_store %arg3[%c0, %c0_0, %c0_1], %0 {strides = array<i32>} : memref<3x20x20xf32, #tpu.memory_space<vmem>>, vector<3x20x20xf32>,
    %c0_2 = arith.constant 0 : index
    %c0_3 = arith.constant 0 : index
    %c0_4 = arith.constant 0 : index
    %2 = vector.load %arg1[%c0_2, %c0_3, %c0_4] : memref<1x3x256xf32, #tpu.memory_space<vmem>>, vector<1x3x16xf32>
    %3 = vector.shape_cast %2 : vector<1x3x16xf32> to vector<3x16xf32>
    %c0_5 = arith.constant 0 : index
    %c2 = arith.constant 2 : index
    %c2_6 = arith.constant 2 : index
    %4 = vector.load %arg3[%c0_5, %c2, %c2_6] : memref<3x20x20xf32, #tpu.memory_space<vmem>>, vector<3x1x16xf32>
    %5 = vector.shape_cast %4 : vector<3x1x16xf32> to vector<3x16xf32>
    %6 = vector.shape_cast %3 : vector<3x16xf32> to vector<3x1x16xf32>
    tpu.vector_store %arg3[%c0_5, %c2, %c2_6], %6 {strides = array<i32>} : memref<3x20x20xf32, #tpu.memory_space<vmem>>, vector<3x1x16xf32>,
    %c0_7 = arith.constant 0 : index
    %c0_8 = arith.constant 0 : index
    %c16 = arith.constant 16 : index
    %7 = vector.load %arg1[%c0_7, %c0_8, %c16] : memref<1x3x256xf32, #tpu.memory_space<vmem>>, vector<1x3x16xf32>
    %8 = vector.shape_cast %7 : vector<1x3x16xf32> to vector<3x16xf32>
    %c0_9 = arith.constant 0 : index
    %c3 = arith.constant 3 : index
    %c2_10 = arith.constant 2 : index
    %9 = vector.load %arg3[%c0_9, %c3, %c2_10] : memref<3x20x20xf32, #tpu.memory_space<vmem>>, vector<3x1x16xf32>
    %10 = vector.shape_cast %9 : vector<3x1x16xf32> to vector<3x16xf32>
    %11 = vector.shape_cast %8 : vector<3x16xf32> to vector<3x1x16xf32>
    tpu.vector_store %arg3[%c0_9, %c3, %c2_10], %11 {strides = array<i32>} : memref<3x20x20xf32, #tpu.memory_space<vmem>>, vector<3x1x16xf32>,
    %c0_11 = arith.constant 0 : index
    %c0_12 = arith.constant 0 : index
    %c32 = arith.constant 32 : index
    %12 = vector.load %arg1[%c0_11, %c0_12, %c32] : memref<1x3x256xf32, #tpu.memory_space<vmem>>, vector<1x3x16xf32>
    %13 = vector.shape_cast %12 : vector<1x3x16xf32> to vector<3x16xf32>
    %c0_13 = arith.constant 0 : index
    %c4 = arith.constant 4 : index
    %c2_14 = arith.constant 2 : index
    %14 = vector.load %arg3[%c0_13, %c4, %c2_14] : memref<3x20x20xf32, #tpu.memory_space<vmem>>, vector<3x1x16xf32>
    %15 = vector.shape_cast %14 : vector<3x1x16xf32> to vector<3x16xf32>
    %16 = vector.shape_cast %13 : vector<3x16xf32> to vector<3x1x16xf32>
    tpu.vector_store %arg3[%c0_13, %c4, %c2_14], %16 {strides = array<i32>} : memref<3x20x20xf32, #tpu.memory_space<vmem>>, vector<3x1x16xf32>,
    %c0_15 = arith.constant 0 : index
    %c0_16 = arith.constant 0 : index
    %c48 = arith.constant 48 : index
    %17 = vector.load %arg1[%c0_15, %c0_16, %c48] : memref<1x3x256xf32, #tpu.memory_space<vmem>>, vector<1x3x16xf32>
    %18 = vector.shape_cast %17 : vector<1x3x16xf32> to vector<3x16xf32>
    %c0_17 = arith.constant 0 : index
    %c5 = arith.constant 5 : index
    %c2_18 = arith.constant 2 : index
    %19 = vector.load %arg3[%c0_17, %c5, %c2_18] : memref<3x20x20xf32, #tpu.memory_space<vmem>>, vector<3x1x16xf32>
    %20 = vector.shape_cast %19 : vector<3x1x16xf32> to vector<3x16xf32>
    %21 = vector.shape_cast %18 : vector<3x16xf32> to vector<3x1x16xf32>
    tpu.vector_store %arg3[%c0_17, %c5, %c2_18], %21 {strides = array<i32>} : memref<3x20x20xf32, #tpu.memory_space<vmem>>, vector<3x1x16xf32>,
    %c0_19 = arith.constant 0 : index
    %c0_20 = arith.constant 0 : index
    %c64 = arith.constant 64 : index
    %22 = vector.load %arg1[%c0_19, %c0_20, %c64] : memref<1x3x256xf32, #tpu.memory_space<vmem>>, vector<1x3x16xf32>
    %23 = vector.shape_cast %22 : vector<1x3x16xf32> to vector<3x16xf32>
    %c0_21 = arith.constant 0 : index
    %c6 = arith.constant 6 : index
    %c2_22 = arith.constant 2 : index
    %24 = vector.load %arg3[%c0_21, %c6, %c2_22] : memref<3x20x20xf32, #tpu.memory_space<vmem>>, vector<3x1x16xf32>
    %25 = vector.shape_cast %24 : vector<3x1x16xf32> to vector<3x16xf32>
    %26 = vector.shape_cast %23 : vector<3x16xf32> to vector<3x1x16xf32>
    tpu.vector_store %arg3[%c0_21, %c6, %c2_22], %26 {strides = array<i32>} : memref<3x20x20xf32, #tpu.memory_space<vmem>>, vector<3x1x16xf32>,
    %c0_23 = arith.constant 0 : index
    %c0_24 = arith.constant 0 : index
    %c80 = arith.constant 80 : index
    %27 = vector.load %arg1[%c0_23, %c0_24, %c80] : memref<1x3x256xf32, #tpu.memory_space<vmem>>, vector<1x3x16xf32>
    %28 = vector.shape_cast %27 : vector<1x3x16xf32> to vector<3x16xf32>
    %c0_25 = arith.constant 0 : index
    %c7 = arith.constant 7 : index
    %c2_26 = arith.constant 2 : index
    %29 = vector.load %arg3[%c0_25, %c7, %c2_26] : memref<3x20x20xf32, #tpu.memory_space<vmem>>, vector<3x1x16xf32>
    %30 = vector.shape_cast %29 : vector<3x1x16xf32> to vector<3x16xf32>
    %31 = vector.shape_cast %28 : vector<3x16xf32> to vector<3x1x16xf32>
    tpu.vector_store %arg3[%c0_25, %c7, %c2_26], %31 {strides = array<i32>} : memref<3x20x20xf32, #tpu.memory_space<vmem>>, vector<3x1x16xf32>,
    %c0_27 = arith.constant 0 : index
    %c0_28 = arith.constant 0 : index
    %c96 = arith.constant 96 : index
    %32 = vector.load %arg1[%c0_27, %c0_28, %c96] : memref<1x3x256xf32, #tpu.memory_space<vmem>>, vector<1x3x16xf32>
    %33 = vector.shape_cast %32 : vector<1x3x16xf32> to vector<3x16xf32>
    %c0_29 = arith.constant 0 : index
    %c8 = arith.constant 8 : index
    %c2_30 = arith.constant 2 : index
    %34 = vector.load %arg3[%c0_29, %c8, %c2_30] : memref<3x20x20xf32, #tpu.memory_space<vmem>>, vector<3x1x16xf32>
    %35 = vector.shape_cast %34 : vector<3x1x16xf32> to vector<3x16xf32>
    %36 = vector.shape_cast %33 : vector<3x16xf32> to vector<3x1x16xf32>
    tpu.vector_store %arg3[%c0_29, %c8, %c2_30], %36 {strides = array<i32>} : memref<3x20x20xf32, #tpu.memory_space<vmem>>, vector<3x1x16xf32>,
    %c0_31 = arith.constant 0 : index
    %c0_32 = arith.constant 0 : index
    %c112 = arith.constant 112 : index
    %37 = vector.load %arg1[%c0_31, %c0_32, %c112] : memref<1x3x256xf32, #tpu.memory_space<vmem>>, vector<1x3x16xf32>
    %38 = vector.shape_cast %37 : vector<1x3x16xf32> to vector<3x16xf32>
    %c0_33 = arith.constant 0 : index
    %c9 = arith.constant 9 : index
    %c2_34 = arith.constant 2 : index
    %39 = vector.load %arg3[%c0_33, %c9, %c2_34] : memref<3x20x20xf32, #tpu.memory_space<vmem>>, vector<3x1x16xf32>
    %40 = vector.shape_cast %39 : vector<3x1x16xf32> to vector<3x16xf32>
    %41 = vector.shape_cast %38 : vector<3x16xf32> to vector<3x1x16xf32>
    tpu.vector_store %arg3[%c0_33, %c9, %c2_34], %41 {strides = array<i32>} : memref<3x20x20xf32, #tpu.memory_space<vmem>>, vector<3x1x16xf32>,
    %c0_35 = arith.constant 0 : index
    %c0_36 = arith.constant 0 : index
    %c128 = arith.constant 128 : index
    %42 = vector.load %arg1[%c0_35, %c0_36, %c128] : memref<1x3x256xf32, #tpu.memory_space<vmem>>, vector<1x3x16xf32>
    %43 = vector.shape_cast %42 : vector<1x3x16xf32> to vector<3x16xf32>
    %c0_37 = arith.constant 0 : index
    %c10 = arith.constant 10 : index
    %c2_38 = arith.constant 2 : index
    %44 = vector.load %arg3[%c0_37, %c10, %c2_38] : memref<3x20x20xf32, #tpu.memory_space<vmem>>, vector<3x1x16xf32>
    %45 = vector.shape_cast %44 : vector<3x1x16xf32> to vector<3x16xf32>
    %46 = vector.shape_cast %43 : vector<3x16xf32> to vector<3x1x16xf32>
    tpu.vector_store %arg3[%c0_37, %c10, %c2_38], %46 {strides = array<i32>} : memref<3x20x20xf32, #tpu.memory_space<vmem>>, vector<3x1x16xf32>,
    %c0_39 = arith.constant 0 : index
    %c0_40 = arith.constant 0 : index
    %c144 = arith.constant 144 : index
    %47 = vector.load %arg1[%c0_39, %c0_40, %c144] : memref<1x3x256xf32, #tpu.memory_space<vmem>>, vector<1x3x16xf32>
    %48 = vector.shape_cast %47 : vector<1x3x16xf32> to vector<3x16xf32>
    %c0_41 = arith.constant 0 : index
    %c11 = arith.constant 11 : index
    %c2_42 = arith.constant 2 : index
    %49 = vector.load %arg3[%c0_41, %c11, %c2_42] : memref<3x20x20xf32, #tpu.memory_space<vmem>>, vector<3x1x16xf32>
    %50 = vector.shape_cast %49 : vector<3x1x16xf32> to vector<3x16xf32>
    %51 = vector.shape_cast %48 : vector<3x16xf32> to vector<3x1x16xf32>
    tpu.vector_store %arg3[%c0_41, %c11, %c2_42], %51 {strides = array<i32>} : memref<3x20x20xf32, #tpu.memory_space<vmem>>, vector<3x1x16xf32>,
    %c0_43 = arith.constant 0 : index
    %c0_44 = arith.constant 0 : index
    %c160 = arith.constant 160 : index
    %52 = vector.load %arg1[%c0_43, %c0_44, %c160] : memref<1x3x256xf32, #tpu.memory_space<vmem>>, vector<1x3x16xf32>
    %53 = vector.shape_cast %52 : vector<1x3x16xf32> to vector<3x16xf32>
    %c0_45 = arith.constant 0 : index
    %c12 = arith.constant 12 : index
    %c2_46 = arith.constant 2 : index
    %54 = vector.load %arg3[%c0_45, %c12, %c2_46] : memref<3x20x20xf32, #tpu.memory_space<vmem>>, vector<3x1x16xf32>
    %55 = vector.shape_cast %54 : vector<3x1x16xf32> to vector<3x16xf32>
    %56 = vector.shape_cast %53 : vector<3x16xf32> to vector<3x1x16xf32>
    tpu.vector_store %arg3[%c0_45, %c12, %c2_46], %56 {strides = array<i32>} : memref<3x20x20xf32, #tpu.memory_space<vmem>>, vector<3x1x16xf32>,
    %c0_47 = arith.constant 0 : index
    %c0_48 = arith.constant 0 : index
    %c176 = arith.constant 176 : index
    %57 = vector.load %arg1[%c0_47, %c0_48, %c176] : memref<1x3x256xf32, #tpu.memory_space<vmem>>, vector<1x3x16xf32>
    %58 = vector.shape_cast %57 : vector<1x3x16xf32> to vector<3x16xf32>
    %c0_49 = arith.constant 0 : index
    %c13 = arith.constant 13 : index
    %c2_50 = arith.constant 2 : index
    %59 = vector.load %arg3[%c0_49, %c13, %c2_50] : memref<3x20x20xf32, #tpu.memory_space<vmem>>, vector<3x1x16xf32>
    %60 = vector.shape_cast %59 : vector<3x1x16xf32> to vector<3x16xf32>
    %61 = vector.shape_cast %58 : vector<3x16xf32> to vector<3x1x16xf32>
    tpu.vector_store %arg3[%c0_49, %c13, %c2_50], %61 {strides = array<i32>} : memref<3x20x20xf32, #tpu.memory_space<vmem>>, vector<3x1x16xf32>,
    %c0_51 = arith.constant 0 : index
    %c0_52 = arith.constant 0 : index
    %c192 = arith.constant 192 : index
    %62 = vector.load %arg1[%c0_51, %c0_52, %c192] : memref<1x3x256xf32, #tpu.memory_space<vmem>>, vector<1x3x16xf32>
    %63 = vector.shape_cast %62 : vector<1x3x16xf32> to vector<3x16xf32>
    %c0_53 = arith.constant 0 : index
    %c14 = arith.constant 14 : index
    %c2_54 = arith.constant 2 : index
    %64 = vector.load %arg3[%c0_53, %c14, %c2_54] : memref<3x20x20xf32, #tpu.memory_space<vmem>>, vector<3x1x16xf32>
    %65 = vector.shape_cast %64 : vector<3x1x16xf32> to vector<3x16xf32>
    %66 = vector.shape_cast %63 : vector<3x16xf32> to vector<3x1x16xf32>
    tpu.vector_store %arg3[%c0_53, %c14, %c2_54], %66 {strides = array<i32>} : memref<3x20x20xf32, #tpu.memory_space<vmem>>, vector<3x1x16xf32>,
    %c0_55 = arith.constant 0 : index
    %c0_56 = arith.constant 0 : index
    %c208 = arith.constant 208 : index
    %67 = vector.load %arg1[%c0_55, %c0_56, %c208] : memref<1x3x256xf32, #tpu.memory_space<vmem>>, vector<1x3x16xf32>
    %68 = vector.shape_cast %67 : vector<1x3x16xf32> to vector<3x16xf32>
    %c0_57 = arith.constant 0 : index
    %c15 = arith.constant 15 : index
    %c2_58 = arith.constant 2 : index
    %69 = vector.load %arg3[%c0_57, %c15, %c2_58] : memref<3x20x20xf32, #tpu.memory_space<vmem>>, vector<3x1x16xf32>
    %70 = vector.shape_cast %69 : vector<3x1x16xf32> to vector<3x16xf32>
    %71 = vector.shape_cast %68 : vector<3x16xf32> to vector<3x1x16xf32>
    tpu.vector_store %arg3[%c0_57, %c15, %c2_58], %71 {strides = array<i32>} : memref<3x20x20xf32, #tpu.memory_space<vmem>>, vector<3x1x16xf32>,
    %c0_59 = arith.constant 0 : index
    %c0_60 = arith.constant 0 : index
    %c224 = arith.constant 224 : index
    %72 = vector.load %arg1[%c0_59, %c0_60, %c224] : memref<1x3x256xf32, #tpu.memory_space<vmem>>, vector<1x3x16xf32>
    %73 = vector.shape_cast %72 : vector<1x3x16xf32> to vector<3x16xf32>
    %c0_61 = arith.constant 0 : index
    %c16_62 = arith.constant 16 : index
    %c2_63 = arith.constant 2 : index
    %74 = vector.load %arg3[%c0_61, %c16_62, %c2_63] : memref<3x20x20xf32, #tpu.memory_space<vmem>>, vector<3x1x16xf32>
    %75 = vector.shape_cast %74 : vector<3x1x16xf32> to vector<3x16xf32>
    %76 = vector.shape_cast %73 : vector<3x16xf32> to vector<3x1x16xf32>
    tpu.vector_store %arg3[%c0_61, %c16_62, %c2_63], %76 {strides = array<i32>} : memref<3x20x20xf32, #tpu.memory_space<vmem>>, vector<3x1x16xf32>,
    %c0_64 = arith.constant 0 : index
    %c0_65 = arith.constant 0 : index
    %c240 = arith.constant 240 : index
    %77 = vector.load %arg1[%c0_64, %c0_65, %c240] : memref<1x3x256xf32, #tpu.memory_space<vmem>>, vector<1x3x16xf32>
    %78 = vector.shape_cast %77 : vector<1x3x16xf32> to vector<3x16xf32>
    %c0_66 = arith.constant 0 : index
    %c17 = arith.constant 17 : index
    %c2_67 = arith.constant 2 : index
    %79 = vector.load %arg3[%c0_66, %c17, %c2_67] : memref<3x20x20xf32, #tpu.memory_space<vmem>>, vector<3x1x16xf32>
    %80 = vector.shape_cast %79 : vector<3x1x16xf32> to vector<3x16xf32>
    %81 = vector.shape_cast %78 : vector<3x16xf32> to vector<3x1x16xf32>
    tpu.vector_store %arg3[%c0_66, %c17, %c2_67], %81 {strides = array<i32>} : memref<3x20x20xf32, #tpu.memory_space<vmem>>, vector<3x1x16xf32>,
    %c0_68 = arith.constant 0 : index
    %c0_69 = arith.constant 0 : index
    %c0_70 = arith.constant 0 : index
    %82 = vector.load %arg3[%c0_68, %c0_69, %c0_70] : memref<3x20x20xf32, #tpu.memory_space<vmem>>, vector<3x20x16xf32>
    %c0_71 = arith.constant 0 : index
    %c0_72 = arith.constant 0 : index
    %c1 = arith.constant 1 : index
    %83 = vector.load %arg3[%c0_71, %c0_72, %c1] : memref<3x20x20xf32, #tpu.memory_space<vmem>>, vector<3x20x16xf32>
    %84 = arith.addf %82, %83 : vector<3x20x16xf32>
    %c0_73 = arith.constant 0 : index
    %c0_74 = arith.constant 0 : index
    %c2_75 = arith.constant 2 : index
    %85 = vector.load %arg3[%c0_73, %c0_74, %c2_75] : memref<3x20x20xf32, #tpu.memory_space<vmem>>, vector<3x20x16xf32>
    %86 = arith.addf %84, %85 : vector<3x20x16xf32>
    %c0_76 = arith.constant 0 : index
    %c0_77 = arith.constant 0 : index
    %c3_78 = arith.constant 3 : index
    %87 = vector.load %arg3[%c0_76, %c0_77, %c3_78] : memref<3x20x20xf32, #tpu.memory_space<vmem>>, vector<3x20x16xf32>
    %88 = arith.addf %86, %87 : vector<3x20x16xf32>
    %c0_79 = arith.constant 0 : index
    %c0_80 = arith.constant 0 : index
    %c4_81 = arith.constant 4 : index
    %89 = vector.load %arg3[%c0_79, %c0_80, %c4_81] : memref<3x20x20xf32, #tpu.memory_space<vmem>>, vector<3x20x16xf32>
    %90 = arith.addf %88, %89 : vector<3x20x16xf32>
    %91 = vector.extract_strided_slice %90 {offsets = [0, 0, 0], sizes = [3, 16, 16], strides = [1, 1, 1]} : vector<3x20x16xf32> to vector<3x16x16xf32>
    %92 = vector.extract_strided_slice %90 {offsets = [0, 1, 0], sizes = [3, 16, 16], strides = [1, 1, 1]} : vector<3x20x16xf32> to vector<3x16x16xf32>
    %93 = arith.addf %91, %92 : vector<3x16x16xf32>
    %94 = vector.extract_strided_slice %90 {offsets = [0, 2, 0], sizes = [3, 16, 16], strides = [1, 1, 1]} : vector<3x20x16xf32> to vector<3x16x16xf32>
    %95 = arith.addf %93, %94 : vector<3x16x16xf32>
    %96 = vector.extract_strided_slice %90 {offsets = [0, 3, 0], sizes = [3, 16, 16], strides = [1, 1, 1]} : vector<3x20x16xf32> to vector<3x16x16xf32>
    %97 = arith.addf %95, %96 : vector<3x16x16xf32>
    %98 = vector.extract_strided_slice %90 {offsets = [0, 4, 0], sizes = [3, 16, 16], strides = [1, 1, 1]} : vector<3x20x16xf32> to vector<3x16x16xf32>
    %99 = arith.addf %97, %98 : vector<3x16x16xf32>
    %c0_82 = arith.constant 0 : index
    %c2_83 = arith.constant 2 : index
    %c2_84 = arith.constant 2 : index
    %100 = vector.load %arg3[%c0_82, %c2_83, %c2_84] : memref<3x20x20xf32, #tpu.memory_space<vmem>>, vector<3x16x16xf32>
    %cst_85 = arith.constant 5.000000e-01 : f32
    %101 = vector.broadcast %cst_85 : f32 to vector<3x16x16xf32>
    %102 = arith.mulf %101, %100 : vector<3x16x16xf32>
    %cst_86 = arith.constant 5.000000e-01 : f32
    %103 = vector.broadcast %cst_86 : f32 to vector<3x16x16xf32>
    %104 = arith.addf %103, %102 : vector<3x16x16xf32>
    %cst_87 = arith.constant 2.000000e-02 : f32
    %105 = vector.broadcast %cst_87 : f32 to vector<3x16x16xf32>
    %106 = arith.mulf %105, %99 : vector<3x16x16xf32>
    %107 = arith.subf %104, %106 : vector<3x16x16xf32>
    %c0_88 = arith.constant 0 : index
    %c0_89 = arith.constant 0 : index
    %c0_90 = arith.constant 0 : index
    %108 = vector.load %arg4[%c0_88, %c0_89, %c0_90] : memref<3x16x16xf32, #tpu.memory_space<vmem>>, vector<3x16x16xf32>
    tpu.vector_store %arg4[%c0_88, %c0_89, %c0_90], %107 {strides = array<i32>} : memref<3x16x16xf32, #tpu.memory_space<vmem>>, vector<3x16x16xf32>,
    %c0_91 = arith.constant 0 : index
    %c0_92 = arith.constant 0 : index
    %c0_93 = arith.constant 0 : index
    %109 = vector.load %arg4[%c0_91, %c0_92, %c0_93] : memref<3x16x16xf32, #tpu.memory_space<vmem>>, vector<3x1x16xf32>
    %110 = vector.shape_cast %109 : vector<3x1x16xf32> to vector<3x16xf32>
    %c0_94 = arith.constant 0 : index
    %c0_95 = arith.constant 0 : index
    %c0_96 = arith.constant 0 : index
    %111 = vector.load %arg2[%c0_94, %c0_95, %c0_96] : memref<1x3x256xf32, #tpu.memory_space<vmem>>, vector<1x3x16xf32>
    %112 = vector.shape_cast %111 : vector<1x3x16xf32> to vector<3x16xf32>
    %113 = vector.shape_cast %110 : vector<3x16xf32> to vector<1x3x16xf32>
    tpu.vector_store %arg2[%c0_94, %c0_95, %c0_96], %113 {strides = array<i32>} : memref<1x3x256xf32, #tpu.memory_space<vmem>>, vector<1x3x16xf32>,
    %c0_97 = arith.constant 0 : index
    %c1_98 = arith.constant 1 : index
    %c0_99 = arith.constant 0 : index
    %114 = vector.load %arg4[%c0_97, %c1_98, %c0_99] : memref<3x16x16xf32, #tpu.memory_space<vmem>>, vector<3x1x16xf32>
    %115 = vector.shape_cast %114 : vector<3x1x16xf32> to vector<3x16xf32>
    %c0_100 = arith.constant 0 : index
    %c0_101 = arith.constant 0 : index
    %c16_102 = arith.constant 16 : index
    %116 = vector.load %arg2[%c0_100, %c0_101, %c16_102] : memref<1x3x256xf32, #tpu.memory_space<vmem>>, vector<1x3x16xf32>
    %117 = vector.shape_cast %116 : vector<1x3x16xf32> to vector<3x16xf32>
    %118 = vector.shape_cast %115 : vector<3x16xf32> to vector<1x3x16xf32>
    tpu.vector_store %arg2[%c0_100, %c0_101, %c16_102], %118 {strides = array<i32>} : memref<1x3x256xf32, #tpu.memory_space<vmem>>, vector<1x3x16xf32>,
    %c0_103 = arith.constant 0 : index
    %c2_104 = arith.constant 2 : index
    %c0_105 = arith.constant 0 : index
    %119 = vector.load %arg4[%c0_103, %c2_104, %c0_105] : memref<3x16x16xf32, #tpu.memory_space<vmem>>, vector<3x1x16xf32>
    %120 = vector.shape_cast %119 : vector<3x1x16xf32> to vector<3x16xf32>
    %c0_106 = arith.constant 0 : index
    %c0_107 = arith.constant 0 : index
    %c32_108 = arith.constant 32 : index
    %121 = vector.load %arg2[%c0_106, %c0_107, %c32_108] : memref<1x3x256xf32, #tpu.memory_space<vmem>>, vector<1x3x16xf32>
    %122 = vector.shape_cast %121 : vector<1x3x16xf32> to vector<3x16xf32>
    %123 = vector.shape_cast %120 : vector<3x16xf32> to vector<1x3x16xf32>
    tpu.vector_store %arg2[%c0_106, %c0_107, %c32_108], %123 {strides = array<i32>} : memref<1x3x256xf32, #tpu.memory_space<vmem>>, vector<1x3x16xf32>,
    %c0_109 = arith.constant 0 : index
    %c3_110 = arith.constant 3 : index
    %c0_111 = arith.constant 0 : index
    %124 = vector.load %arg4[%c0_109, %c3_110, %c0_111] : memref<3x16x16xf32, #tpu.memory_space<vmem>>, vector<3x1x16xf32>
    %125 = vector.shape_cast %124 : vector<3x1x16xf32> to vector<3x16xf32>
    %c0_112 = arith.constant 0 : index
    %c0_113 = arith.constant 0 : index
    %c48_114 = arith.constant 48 : index
    %126 = vector.load %arg2[%c0_112, %c0_113, %c48_114] : memref<1x3x256xf32, #tpu.memory_space<vmem>>, vector<1x3x16xf32>
    %127 = vector.shape_cast %126 : vector<1x3x16xf32> to vector<3x16xf32>
    %128 = vector.shape_cast %125 : vector<3x16xf32> to vector<1x3x16xf32>
    tpu.vector_store %arg2[%c0_112, %c0_113, %c48_114], %128 {strides = array<i32>} : memref<1x3x256xf32, #tpu.memory_space<vmem>>, vector<1x3x16xf32>,
    %c0_115 = arith.constant 0 : index
    %c4_116 = arith.constant 4 : index
    %c0_117 = arith.constant 0 : index
    %129 = vector.load %arg4[%c0_115, %c4_116, %c0_117] : memref<3x16x16xf32, #tpu.memory_space<vmem>>, vector<3x1x16xf32>
    %130 = vector.shape_cast %129 : vector<3x1x16xf32> to vector<3x16xf32>
    %c0_118 = arith.constant 0 : index
    %c0_119 = arith.constant 0 : index
    %c64_120 = arith.constant 64 : index
    %131 = vector.load %arg2[%c0_118, %c0_119, %c64_120] : memref<1x3x256xf32, #tpu.memory_space<vmem>>, vector<1x3x16xf32>
    %132 = vector.shape_cast %131 : vector<1x3x16xf32> to vector<3x16xf32>
    %133 = vector.shape_cast %130 : vector<3x16xf32> to vector<1x3x16xf32>
    tpu.vector_store %arg2[%c0_118, %c0_119, %c64_120], %133 {strides = array<i32>} : memref<1x3x256xf32, #tpu.memory_space<vmem>>, vector<1x3x16xf32>,
    %c0_121 = arith.constant 0 : index
    %c5_122 = arith.constant 5 : index
    %c0_123 = arith.constant 0 : index
    %134 = vector.load %arg4[%c0_121, %c5_122, %c0_123] : memref<3x16x16xf32, #tpu.memory_space<vmem>>, vector<3x1x16xf32>
    %135 = vector.shape_cast %134 : vector<3x1x16xf32> to vector<3x16xf32>
    %c0_124 = arith.constant 0 : index
    %c0_125 = arith.constant 0 : index
    %c80_126 = arith.constant 80 : index
    %136 = vector.load %arg2[%c0_124, %c0_125, %c80_126] : memref<1x3x256xf32, #tpu.memory_space<vmem>>, vector<1x3x16xf32>
    %137 = vector.shape_cast %136 : vector<1x3x16xf32> to vector<3x16xf32>
    %138 = vector.shape_cast %135 : vector<3x16xf32> to vector<1x3x16xf32>
    tpu.vector_store %arg2[%c0_124, %c0_125, %c80_126], %138 {strides = array<i32>} : memref<1x3x256xf32, #tpu.memory_space<vmem>>, vector<1x3x16xf32>,
    %c0_127 = arith.constant 0 : index
    %c6_128 = arith.constant 6 : index
    %c0_129 = arith.constant 0 : index
    %139 = vector.load %arg4[%c0_127, %c6_128, %c0_129] : memref<3x16x16xf32, #tpu.memory_space<vmem>>, vector<3x1x16xf32>
    %140 = vector.shape_cast %139 : vector<3x1x16xf32> to vector<3x16xf32>
    %c0_130 = arith.constant 0 : index
    %c0_131 = arith.constant 0 : index
    %c96_132 = arith.constant 96 : index
    %141 = vector.load %arg2[%c0_130, %c0_131, %c96_132] : memref<1x3x256xf32, #tpu.memory_space<vmem>>, vector<1x3x16xf32>
    %142 = vector.shape_cast %141 : vector<1x3x16xf32> to vector<3x16xf32>
    %143 = vector.shape_cast %140 : vector<3x16xf32> to vector<1x3x16xf32>
    tpu.vector_store %arg2[%c0_130, %c0_131, %c96_132], %143 {strides = array<i32>} : memref<1x3x256xf32, #tpu.memory_space<vmem>>, vector<1x3x16xf32>,
    %c0_133 = arith.constant 0 : index
    %c7_134 = arith.constant 7 : index
    %c0_135 = arith.constant 0 : index
    %144 = vector.load %arg4[%c0_133, %c7_134, %c0_135] : memref<3x16x16xf32, #tpu.memory_space<vmem>>, vector<3x1x16xf32>
    %145 = vector.shape_cast %144 : vector<3x1x16xf32> to vector<3x16xf32>
    %c0_136 = arith.constant 0 : index
    %c0_137 = arith.constant 0 : index
    %c112_138 = arith.constant 112 : index
    %146 = vector.load %arg2[%c0_136, %c0_137, %c112_138] : memref<1x3x256xf32, #tpu.memory_space<vmem>>, vector<1x3x16xf32>
    %147 = vector.shape_cast %146 : vector<1x3x16xf32> to vector<3x16xf32>
    %148 = vector.shape_cast %145 : vector<3x16xf32> to vector<1x3x16xf32>
    tpu.vector_store %arg2[%c0_136, %c0_137, %c112_138], %148 {strides = array<i32>} : memref<1x3x256xf32, #tpu.memory_space<vmem>>, vector<1x3x16xf32>,
    %c0_139 = arith.constant 0 : index
    %c8_140 = arith.constant 8 : index
    %c0_141 = arith.constant 0 : index
    %149 = vector.load %arg4[%c0_139, %c8_140, %c0_141] : memref<3x16x16xf32, #tpu.memory_space<vmem>>, vector<3x1x16xf32>
    %150 = vector.shape_cast %149 : vector<3x1x16xf32> to vector<3x16xf32>
    %c0_142 = arith.constant 0 : index
    %c0_143 = arith.constant 0 : index
    %c128_144 = arith.constant 128 : index
    %151 = vector.load %arg2[%c0_142, %c0_143, %c128_144] : memref<1x3x256xf32, #tpu.memory_space<vmem>>, vector<1x3x16xf32>
    %152 = vector.shape_cast %151 : vector<1x3x16xf32> to vector<3x16xf32>
    %153 = vector.shape_cast %150 : vector<3x16xf32> to vector<1x3x16xf32>
    tpu.vector_store %arg2[%c0_142, %c0_143, %c128_144], %153 {strides = array<i32>} : memref<1x3x256xf32, #tpu.memory_space<vmem>>, vector<1x3x16xf32>,
    %c0_145 = arith.constant 0 : index
    %c9_146 = arith.constant 9 : index
    %c0_147 = arith.constant 0 : index
    %154 = vector.load %arg4[%c0_145, %c9_146, %c0_147] : memref<3x16x16xf32, #tpu.memory_space<vmem>>, vector<3x1x16xf32>
    %155 = vector.shape_cast %154 : vector<3x1x16xf32> to vector<3x16xf32>
    %c0_148 = arith.constant 0 : index
    %c0_149 = arith.constant 0 : index
    %c144_150 = arith.constant 144 : index
    %156 = vector.load %arg2[%c0_148, %c0_149, %c144_150] : memref<1x3x256xf32, #tpu.memory_space<vmem>>, vector<1x3x16xf32>
    %157 = vector.shape_cast %156 : vector<1x3x16xf32> to vector<3x16xf32>
    %158 = vector.shape_cast %155 : vector<3x16xf32> to vector<1x3x16xf32>
    tpu.vector_store %arg2[%c0_148, %c0_149, %c144_150], %158 {strides = array<i32>} : memref<1x3x256xf32, #tpu.memory_space<vmem>>, vector<1x3x16xf32>,
    %c0_151 = arith.constant 0 : index
    %c10_152 = arith.constant 10 : index
    %c0_153 = arith.constant 0 : index
    %159 = vector.load %arg4[%c0_151, %c10_152, %c0_153] : memref<3x16x16xf32, #tpu.memory_space<vmem>>, vector<3x1x16xf32>
    %160 = vector.shape_cast %159 : vector<3x1x16xf32> to vector<3x16xf32>
    %c0_154 = arith.constant 0 : index
    %c0_155 = arith.constant 0 : index
    %c160_156 = arith.constant 160 : index
    %161 = vector.load %arg2[%c0_154, %c0_155, %c160_156] : memref<1x3x256xf32, #tpu.memory_space<vmem>>, vector<1x3x16xf32>
    %162 = vector.shape_cast %161 : vector<1x3x16xf32> to vector<3x16xf32>
    %163 = vector.shape_cast %160 : vector<3x16xf32> to vector<1x3x16xf32>
    tpu.vector_store %arg2[%c0_154, %c0_155, %c160_156], %163 {strides = array<i32>} : memref<1x3x256xf32, #tpu.memory_space<vmem>>, vector<1x3x16xf32>,
    %c0_157 = arith.constant 0 : index
    %c11_158 = arith.constant 11 : index
    %c0_159 = arith.constant 0 : index
    %164 = vector.load %arg4[%c0_157, %c11_158, %c0_159] : memref<3x16x16xf32, #tpu.memory_space<vmem>>, vector<3x1x16xf32>
    %165 = vector.shape_cast %164 : vector<3x1x16xf32> to vector<3x16xf32>
    %c0_160 = arith.constant 0 : index
    %c0_161 = arith.constant 0 : index
    %c176_162 = arith.constant 176 : index
    %166 = vector.load %arg2[%c0_160, %c0_161, %c176_162] : memref<1x3x256xf32, #tpu.memory_space<vmem>>, vector<1x3x16xf32>
    %167 = vector.shape_cast %166 : vector<1x3x16xf32> to vector<3x16xf32>
    %168 = vector.shape_cast %165 : vector<3x16xf32> to vector<1x3x16xf32>
    tpu.vector_store %arg2[%c0_160, %c0_161, %c176_162], %168 {strides = array<i32>} : memref<1x3x256xf32, #tpu.memory_space<vmem>>, vector<1x3x16xf32>,
    %c0_163 = arith.constant 0 : index
    %c12_164 = arith.constant 12 : index
    %c0_165 = arith.constant 0 : index
    %169 = vector.load %arg4[%c0_163, %c12_164, %c0_165] : memref<3x16x16xf32, #tpu.memory_space<vmem>>, vector<3x1x16xf32>
    %170 = vector.shape_cast %169 : vector<3x1x16xf32> to vector<3x16xf32>
    %c0_166 = arith.constant 0 : index
    %c0_167 = arith.constant 0 : index
    %c192_168 = arith.constant 192 : index
    %171 = vector.load %arg2[%c0_166, %c0_167, %c192_168] : memref<1x3x256xf32, #tpu.memory_space<vmem>>, vector<1x3x16xf32>
    %172 = vector.shape_cast %171 : vector<1x3x16xf32> to vector<3x16xf32>
    %173 = vector.shape_cast %170 : vector<3x16xf32> to vector<1x3x16xf32>
    tpu.vector_store %arg2[%c0_166, %c0_167, %c192_168], %173 {strides = array<i32>} : memref<1x3x256xf32, #tpu.memory_space<vmem>>, vector<1x3x16xf32>,
    %c0_169 = arith.constant 0 : index
    %c13_170 = arith.constant 13 : index
    %c0_171 = arith.constant 0 : index
    %174 = vector.load %arg4[%c0_169, %c13_170, %c0_171] : memref<3x16x16xf32, #tpu.memory_space<vmem>>, vector<3x1x16xf32>
    %175 = vector.shape_cast %174 : vector<3x1x16xf32> to vector<3x16xf32>
    %c0_172 = arith.constant 0 : index
    %c0_173 = arith.constant 0 : index
    %c208_174 = arith.constant 208 : index
    %176 = vector.load %arg2[%c0_172, %c0_173, %c208_174] : memref<1x3x256xf32, #tpu.memory_space<vmem>>, vector<1x3x16xf32>
    %177 = vector.shape_cast %176 : vector<1x3x16xf32> to vector<3x16xf32>
    %178 = vector.shape_cast %175 : vector<3x16xf32> to vector<1x3x16xf32>
    tpu.vector_store %arg2[%c0_172, %c0_173, %c208_174], %178 {strides = array<i32>} : memref<1x3x256xf32, #tpu.memory_space<vmem>>, vector<1x3x16xf32>,
    %c0_175 = arith.constant 0 : index
    %c14_176 = arith.constant 14 : index
    %c0_177 = arith.constant 0 : index
    %179 = vector.load %arg4[%c0_175, %c14_176, %c0_177] : memref<3x16x16xf32, #tpu.memory_space<vmem>>, vector<3x1x16xf32>
    %180 = vector.shape_cast %179 : vector<3x1x16xf32> to vector<3x16xf32>
    %c0_178 = arith.constant 0 : index
    %c0_179 = arith.constant 0 : index
    %c224_180 = arith.constant 224 : index
    %181 = vector.load %arg2[%c0_178, %c0_179, %c224_180] : memref<1x3x256xf32, #tpu.memory_space<vmem>>, vector<1x3x16xf32>
    %182 = vector.shape_cast %181 : vector<1x3x16xf32> to vector<3x16xf32>
    %183 = vector.shape_cast %180 : vector<3x16xf32> to vector<1x3x16xf32>
    tpu.vector_store %arg2[%c0_178, %c0_179, %c224_180], %183 {strides = array<i32>} : memref<1x3x256xf32, #tpu.memory_space<vmem>>, vector<1x3x16xf32>,
    %c0_181 = arith.constant 0 : index
    %c15_182 = arith.constant 15 : index
    %c0_183 = arith.constant 0 : index
    %184 = vector.load %arg4[%c0_181, %c15_182, %c0_183] : memref<3x16x16xf32, #tpu.memory_space<vmem>>, vector<3x1x16xf32>
    %185 = vector.shape_cast %184 : vector<3x1x16xf32> to vector<3x16xf32>
    %c0_184 = arith.constant 0 : index
    %c0_185 = arith.constant 0 : index
    %c240_186 = arith.constant 240 : index
    %186 = vector.load %arg2[%c0_184, %c0_185, %c240_186] : memref<1x3x256xf32, #tpu.memory_space<vmem>>, vector<1x3x16xf32>
    %187 = vector.shape_cast %186 : vector<1x3x16xf32> to vector<3x16xf32>
    %188 = vector.shape_cast %185 : vector<3x16xf32> to vector<1x3x16xf32>
    tpu.vector_store %arg2[%c0_184, %c0_185, %c240_186], %188 {strides = array<i32>} : memref<1x3x256xf32, #tpu.memory_space<vmem>>, vector<1x3x16xf32>,
    return
  }
  func.func @transform_0(%arg0: i32) -> (i32, i32, i32) {
    %c0_i32 = arith.constant 0 : i32
    %c0_i32_0 = arith.constant 0 : i32
    %c0_i32_1 = arith.constant 0 : i32
    return %arg0, %c0_i32, %c0_i32_0 : i32, i32, i32
  }
  func.func @transform_1(%arg0: i32) -> (i32, i32, i32) {
    %c0_i32 = arith.constant 0 : i32
    %c0_i32_0 = arith.constant 0 : i32
    %c0_i32_1 = arith.constant 0 : i32
    return %arg0, %c0_i32, %c0_i32_0 : i32, i32, i32
  }
}

</mosaic_0001>

<llo_original>
// kernel: filter_high.1
$region0: #{filter_high.1}
  #allocation0 [shape = 'u32[]', space=smem, size = 0x4, offset = 0x4, fixed_abs, tag = 'smem constant byte address 0x4 - core index']
  #allocation1 [shape = 'u32[144,128]{1,0:T(1,128)}', space=vmem, size = 0x12000, scoped, tag = 'internal scratch']
  #allocation2 [shape = 'f32[3,20,20]{2,1,0:T(8,128)}', space=vmem, size = 0x9000, scoped, tag = 'scratch operand']
  #allocation3 [shape = 'f32[3,16,16]{2,1,0:T(8,128)}', space=vmem, size = 0x6000, scoped, tag = 'scratch operand']
  %s0 = inlined_call_operand.vmem [shape: f32[2,3,256], index: 0, kind: input, shape index: {}]
  %s1 = inlined_call_operand.vmem [shape: f32[2,3,256], index: 1, kind: output, shape index: {}]
  %s2 = sld [smem:[#allocation0]]
  $region37: #{filter_high.1} parent=0
    _
  %s4 = ssub.s32 1, %s2
  %s5 = scalar_select 0, %s4, %s2
  loop: start=0, step=1, limit=4
  $region2: #{filter_high.1} parent=0 // loop_pre_header
    _
  $region3: #{filter_high.1} parent=0 // loop_header
    %s7 = sphi 0, %s11
    %p8 = scmp.ge.s32.totalorder %s7, 4
    %s17 = sphi 0, %s19
    %s20 = sphi 0, %s17
    %s21 = sphi 0, %s20
    %s37 = sphi 0, %s21
    %s43 = sphi 0, %s45
    %s46 = sphi 0, %s43
    %s47 = sphi 0, %s46
    %s63 = sphi 0, %s47
  $region4: #{filter_high.1} parent=0 // loop_header_branch
    %10 = sbr.rel (%p8) target = $region8
  $region5: #{filter_high.1} parent=0 // loop_body
    %s12 = ssub.s32 %s7, 1
    %s13 = ssub.s32 %s7, 2
    %s14 = sadd.s32 %s7, 1
    %s15 = ssub.s32 %s7, %s14
    %p16 = scmp.eq.s32.totalorder %s15, 0
    %s18 = sadd.s32 %s17, 1
    %s19 = scalar_select %p16, %s17, %s18
    %p22 = pneg %p16
    %p23 = scmp.eq.s32.totalorder %s7, 1
    %p24 = por %p22, %p23
    %p25 = scmp.ne.s32.totalorder %s17, %s20
    %p26 = scmp.eq.s32.totalorder %s7, 0
    %p27 = por %p25, %p26
    %p28 = scmp.ne.s32.totalorder %s17, %s20
    %p29 = scmp.eq.s32.totalorder %s12, 1
    %p30 = por %p28, %p29
    %p31 = scmp.ne.s32.totalorder %s20, %s21
    %p32 = scmp.eq.s32.totalorder %s12, 0
    %p33 = por %p31, %p32
    %p34 = scmp.ne.s32.totalorder %s20, %s21
    %p35 = scmp.eq.s32.totalorder %s13, 1
    %p36 = por %p34, %p35
    %p38 = scmp.ne.s32.totalorder %s21, %s37
    %p39 = scmp.eq.s32.totalorder %s13, 0
    %p40 = por %p38, %p39
    %s41 = ssub.s32 %s7, %s14
    %p42 = scmp.eq.s32.totalorder %s41, 0
    %s44 = sadd.s32 %s43, 1
    %s45 = scalar_select %p42, %s43, %s44
    %p48 = pneg %p42
    %p49 = scmp.eq.s32.totalorder %s7, 1
    %p50 = por %p48, %p49
    %p51 = scmp.ne.s32.totalorder %s43, %s46
    %p52 = scmp.eq.s32.totalorder %s7, 0
    %p53 = por %p51, %p52
    %p54 = scmp.ne.s32.totalorder %s43, %s46
    %p55 = scmp.eq.s32.totalorder %s12, 1
    %p56 = por %p54, %p55
    %p57 = scmp.ne.s32.totalorder %s46, %s47
    %p58 = scmp.eq.s32.totalorder %s12, 0
    %p59 = por %p57, %p58
    %p60 = scmp.ne.s32.totalorder %s46, %s47
    %p61 = scmp.eq.s32.totalorder %s13, 1
    %p62 = por %p60, %p61
    %p64 = scmp.ne.s32.totalorder %s47, %s63
    %p65 = scmp.eq.s32.totalorder %s13, 0
    %p66 = por %p64, %p65
    %p67 = scmp.le.s32.totalorder 1, %s7
    %p68 = scmp.lt.s32.totalorder %s7, 3
    %p69 = pnand %p67, %p68
    %p70 = pneg %p69
    // Predicated region
    $region9: #{filter_high.1} parent=5 // pred_check
      _
    $region10: #{filter_high.1} parent=5 // pred_check_branch
      %72 = sbr.rel (%p69) target = $region12
    $region11: #{filter_high.1} parent=5 // pred_region
      %s73 = ssub.s32 %s7, 1
    $region12: #{filter_high.1} parent=5 // pred_fallthru
      _
    %p74 = scmp.lt.s32.totalorder %s7, 2
    // Predicated region
    $region13: #{filter_high.1} parent=5 // pred_check
      %p75 = pneg %p74
    $region14: #{filter_high.1} parent=5 // pred_check_branch
      %77 = sbr.rel (%p75) target = $region16
    $region15: #{filter_high.1} parent=5 // pred_region
      // Predicated region
      $region17: #{filter_high.1} parent=15 // pred_check
        %p78 = pneg %p27
      $region18: #{filter_high.1} parent=15 // pred_check_branch
        %80 = sbr.rel (%p78) target = $region20
      $region19: #{filter_high.1} parent=15 // pred_region
        %p81 = scmp.lt.s32.totalorder %s7, 1
        %s82 = scalar_select %p81, %s7, 1
        %s83 = smul.addr %s82, 2
        %s84 = smul.addr %s83, 4
        %s85 = scalar_lea.vmem %s0, %s84
      $region20: #{filter_high.1} parent=15 // pred_fallthru
        _
    $region16: #{filter_high.1} parent=5 // pred_fallthru
      _
    %p86 = scmp.le.s32.totalorder 1, %s7
    %p87 = scmp.lt.s32.totalorder %s7, 3
    %p88 = pnand %p86, %p87
    %p89 = pneg %p88
    // Predicated region
    $region21: #{filter_high.1} parent=5 // pred_check
      _
    $region22: #{filter_high.1} parent=5 // pred_check_branch
      %91 = sbr.rel (%p88) target = $region24
    $region23: #{filter_high.1} parent=5 // pred_region
      %s92 = ssub.s32 %s7, 1
      %p93 = scmp.lt.s32.totalorder %s12, 1
      %s94 = scalar_select %p93, %s12, 1
      %s95 = smul.addr %s94, 2
      %s96 = smul.addr %s95, 4
      %s97 = scalar_lea.vmem %s0, %s96
      %p98 = pneg %p33
      %p99 = pneg %p30
      %p100 = pneg %p59
      %p101 = pneg %p56
      %p102 = scmp.lt.s32.totalorder %s12, 1
      %s103 = scalar_select %p102, %s12, 1
      %s104 = smul.addr %s103, 2
      %s105 = smul.addr %s104, 4
      %s106 = scalar_lea.vmem %s1, %s105
      %p107 = scmp.lt.s32.totalorder %s12, 1
      %s108 = scalar_select %p107, %s12, 1
      %s109 = smul.addr %s108, 2
      %s110 = smul.addr %s109, 4
      %s111 = scalar_lea.vmem %s0, %s110
      %p112 = scmp.lt.s32.totalorder %s12, 1
      %s113 = scalar_select %p112, %s12, 1
      %s114 = smul.addr %s113, 2
      %s115 = smul.addr %s114, 4
      %s116 = scalar_lea.vmem %s1, %s115
      %vm117 = vcmask 162816
      %118 = vst.msk [vmem:[#allocation2] sm:$0xff] %vm117, 0.0
      %119 = vst.msk [vmem:[#allocation2 + $0x8] sm:$0xff] %vm117, 0.0
      %vm120 = vcmask 158720
      %121 = vst.msk [vmem:[#allocation2 + $0x10] sm:$0xf] %vm120, 0.0
      %122 = vst.msk [vmem:[#allocation2 + $0x18] sm:$0xff] %vm117, 0.0
      %123 = vst.msk [vmem:[#allocation2 + $0x20] sm:$0xff] %vm117, 0.0
      %124 = vst.msk [vmem:[#allocation2 + $0x28] sm:$0xf] %vm120, 0.0
      %125 = vst.msk [vmem:[#allocation2 + $0x30] sm:$0xff] %vm117, 0.0
      %126 = vst.msk [vmem:[#allocation2 + $0x38] sm:$0xff] %vm117, 0.0
      %127 = vst.msk [vmem:[#allocation2 + $0x40] sm:$0xf] %vm120, 0.0
      %v128 = vld [vmem:[%s111] sm:$0x7]
      %v131 = vunpack.c.l.s4 1966171168
      %v132 = vunpack.c.0.s8 %v131
      %v133 = vlaneseq
      %v134 = vshrl.u32 %v133, 7
      %v135 = vsub.s32 %v132, %v134
      %v136 = vrot.slane %v128, %v135
      %v137 = vcombine.high %v136, %v136
      %v139 = vunpack.c.l.s4 1966171168
      %v140 = vunpack.c.0.s8 %v139
      %v141 = vlaneseq
      %v142 = vshrl.u32 %v141, 7
      %v143 = vsub.s32 %v140, %v142
      %v144 = vrot.slane %v136, %v143
      %v146 = vunpack.c.l.s4 1966171168
      %v147 = vunpack.c.0.s8 %v146
      %v148 = vlaneseq
      %v149 = vshrl.u32 %v148, 7
      %v150 = vsub.s32 %v147, %v149
      %v151 = vrot.slane %v137, %v150
      %v152 = vcombine.high %v144, %v144
      %v153 = vlaneseq
      %v154 = vshrl.u32 %v153, 7
      %v155 = vsub.s32 0, %v154
      %v156 = vrot.slane %v144, %v155
      %v157 = vlaneseq
      %v158 = vshrl.u32 %v157, 7
      %v159 = vsub.s32 0, %v158
      %v160 = vrot.slane %v151, %v159
      %v161 = vlaneseq
      %v162 = vshrl.u32 %v161, 7
      %v163 = vsub.s32 0, %v162
      %v164 = vrot.slane %v152, %v163
      %165 = vrot.lane.b32.xlu0 %v156, 2
      %v166 = vpop.permute.xlu0 %165
      %167 = vrot.lane.b32.xlu0 %v160, 2
      %v168 = vpop.permute.xlu0 %167
      %169 = vrot.lane.b32.xlu0 %v164, 2
      %v170 = vpop.permute.xlu0 %169
      %vm174 = vcmask 139280
      %175 = vst.msk [vmem:[#allocation2 + $0x2] sm:$0x1] %vm174, %v166
      %176 = vst.msk [vmem:[#allocation2 + $0x1a] sm:$0x1] %vm174, %v168
      %177 = vst.msk [vmem:[#allocation2 + $0x32] sm:$0x1] %vm174, %v170
      %v178 = vld [vmem:[%s111] sm:$0x7]
      %v181 = vunpack.c.l.s4 1966171168
      %v182 = vunpack.c.0.s8 %v181
      %v183 = vlaneseq
      %v184 = vshrl.u32 %v183, 7
      %v185 = vsub.s32 %v182, %v184
      %v186 = vrot.slane %v178, %v185
      %v187 = vcombine.high %v186, %v186
      %v189 = vunpack.c.l.s4 1966171168
      %v190 = vunpack.c.0.s8 %v189
      %v191 = vlaneseq
      %v192 = vshrl.u32 %v191, 7
      %v193 = vsub.s32 %v190, %v192
      %v194 = vrot.slane %v186, %v193
      %v196 = vunpack.c.l.s4 1966171168
      %v197 = vunpack.c.0.s8 %v196
      %v198 = vlaneseq
      %v199 = vshrl.u32 %v198, 7
      %v200 = vsub.s32 %v197, %v199
      %v201 = vrot.slane %v187, %v200
      %v202 = vcombine.high %v194, %v194
      %v203 = vlaneseq
      %v204 = vshrl.u32 %v203, 7
      %v205 = vsub.s32 0, %v204
      %v206 = vrot.slane %v194, %v205
      %v207 = vlaneseq
      %v208 = vshrl.u32 %v207, 7
      %v209 = vsub.s32 0, %v208
      %v210 = vrot.slane %v201, %v209
      %v211 = vlaneseq
      %v212 = vshrl.u32 %v211, 7
      %v213 = vsub.s32 0, %v212
      %v214 = vrot.slane %v202, %v213
      %215 = vrot.lane.b32.xlu0 %v206, 114
      %v216 = vpop.permute.xlu0 %215
      %217 = vrot.lane.b32.xlu0 %v210, 114
      %v218 = vpop.permute.xlu0 %217
      %219 = vrot.lane.b32.xlu0 %v214, 114
      %v220 = vpop.permute.xlu0 %219
      %224 = vst.msk [vmem:[#allocation2 + $0x3] sm:$0x1] %vm174, %v216
      %225 = vst.msk [vmem:[#allocation2 + $0x1b] sm:$0x1] %vm174, %v218
      %226 = vst.msk [vmem:[#allocation2 + $0x33] sm:$0x1] %vm174, %v220
      %v227 = vld [vmem:[%s111] sm:$0x7]
      %v230 = vunpack.c.l.s4 1966171168
      %v231 = vunpack.c.0.s8 %v230
      %v232 = vlaneseq
      %v233 = vshrl.u32 %v232, 7
      %v234 = vsub.s32 %v231, %v233
      %v235 = vrot.slane %v227, %v234
      %v236 = vcombine.high %v235, %v235
      %v238 = vunpack.c.l.s4 1966171168
      %v239 = vunpack.c.0.s8 %v238
      %v240 = vlaneseq
      %v241 = vshrl.u32 %v240, 7
      %v242 = vsub.s32 %v239, %v241
      %v243 = vrot.slane %v235, %v242
      %v245 = vunpack.c.l.s4 1966171168
      %v246 = vunpack.c.0.s8 %v245
      %v247 = vlaneseq
      %v248 = vshrl.u32 %v247, 7
      %v249 = vsub.s32 %v246, %v248
      %v250 = vrot.slane %v236, %v249
      %v251 = vcombine.high %v243, %v243
      %v252 = vlaneseq
      %v253 = vshrl.u32 %v252, 7
      %v254 = vsub.s32 0, %v253
      %v255 = vrot.slane %v243, %v254
      %v256 = vlaneseq
      %v257 = vshrl.u32 %v256, 7
      %v258 = vsub.s32 0, %v257
      %v259 = vrot.slane %v250, %v258
      %v260 = vlaneseq
      %v261 = vshrl.u32 %v260, 7
      %v262 = vsub.s32 0, %v261
      %v263 = vrot.slane %v251, %v262
      %264 = vrot.lane.b32.xlu0 %v255, 98
      %v265 = vpop.permute.xlu0 %264
      %266 = vrot.lane.b32.xlu0 %v259, 98
      %v267 = vpop.permute.xlu0 %266
      %268 = vrot.lane.b32.xlu0 %v263, 98
      %v269 = vpop.permute.xlu0 %268
      %273 = vst.msk [vmem:[#allocation2 + $0x4] sm:$0x1] %vm174, %v265
      %274 = vst.msk [vmem:[#allocation2 + $0x1c] sm:$0x1] %vm174, %v267
      %275 = vst.msk [vmem:[#allocation2 + $0x34] sm:$0x1] %vm174, %v269
      %v276 = vld [vmem:[%s111] sm:$0x7]
      %v279 = vunpack.c.l.s4 1966171168
      %v280 = vunpack.c.0.s8 %v279
      %v281 = vlaneseq
      %v282 = vshrl.u32 %v281, 7
      %v283 = vsub.s32 %v280, %v282
      %v284 = vrot.slane %v276, %v283
      %v285 = vcombine.high %v284, %v284
      %v287 = vunpack.c.l.s4 1966171168
      %v288 = vunpack.c.0.s8 %v287
      %v289 = vlaneseq
      %v290 = vshrl.u32 %v289, 7
      %v291 = vsub.s32 %v288, %v290
      %v292 = vrot.slane %v284, %v291
      %v294 = vunpack.c.l.s4 1966171168
      %v295 = vunpack.c.0.s8 %v294
      %v296 = vlaneseq
      %v297 = vshrl.u32 %v296, 7
      %v298 = vsub.s32 %v295, %v297
      %v299 = vrot.slane %v285, %v298
      %v300 = vcombine.high %v292, %v292
      %v301 = vlaneseq
      %v302 = vshrl.u32 %v301, 7
      %v303 = vsub.s32 0, %v302
      %v304 = vrot.slane %v292, %v303
      %v305 = vlaneseq
      %v306 = vshrl.u32 %v305, 7
      %v307 = vsub.s32 0, %v306
      %v308 = vrot.slane %v299, %v307
      %v309 = vlaneseq
      %v310 = vshrl.u32 %v309, 7
      %v311 = vsub.s32 0, %v310
      %v312 = vrot.slane %v300, %v311
      %313 = vrot.lane.b32.xlu0 %v304, 82
      %v314 = vpop.permute.xlu0 %313
      %315 = vrot.lane.b32.xlu0 %v308, 82
      %v316 = vpop.permute.xlu0 %315
      %317 = vrot.lane.b32.xlu0 %v312, 82
      %v318 = vpop.permute.xlu0 %317
      %322 = vst.msk [vmem:[#allocation2 + $0x5] sm:$0x1] %vm174, %v314
      %323 = vst.msk [vmem:[#allocation2 + $0x1d] sm:$0x1] %vm174, %v316
      %324 = vst.msk [vmem:[#allocation2 + $0x35] sm:$0x1] %vm174, %v318
      %v325 = vld [vmem:[%s111] sm:$0x7]
      %v328 = vunpack.c.l.s4 1966171168
      %v329 = vunpack.c.0.s8 %v328
      %v330 = vlaneseq
      %v331 = vshrl.u32 %v330, 7
      %v332 = vsub.s32 %v329, %v331
      %v333 = vrot.slane %v325, %v332
      %v334 = vcombine.high %v333, %v333
      %v336 = vunpack.c.l.s4 1966171168
      %v337 = vunpack.c.0.s8 %v336
      %v338 = vlaneseq
      %v339 = vshrl.u32 %v338, 7
      %v340 = vsub.s32 %v337, %v339
      %v341 = vrot.slane %v333, %v340
      %v343 = vunpack.c.l.s4 1966171168
      %v344 = vunpack.c.0.s8 %v343
      %v345 = vlaneseq
      %v346 = vshrl.u32 %v345, 7
      %v347 = vsub.s32 %v344, %v346
      %v348 = vrot.slane %v334, %v347
      %v349 = vcombine.high %v341, %v341
      %v350 = vlaneseq
      %v351 = vshrl.u32 %v350, 7
      %v352 = vsub.s32 0, %v351
      %v353 = vrot.slane %v341, %v352
      %v354 = vlaneseq
      %v355 = vshrl.u32 %v354, 7
      %v356 = vsub.s32 0, %v355
      %v357 = vrot.slane %v348, %v356
      %v358 = vlaneseq
      %v359 = vshrl.u32 %v358, 7
      %v360 = vsub.s32 0, %v359
      %v361 = vrot.slane %v349, %v360
      %362 = vrot.lane.b32.xlu0 %v353, 66
      %v363 = vpop.permute.xlu0 %362
      %364 = vrot.lane.b32.xlu0 %v357, 66
      %v365 = vpop.permute.xlu0 %364
      %366 = vrot.lane.b32.xlu0 %v361, 66
      %v367 = vpop.permute.xlu0 %366
      %371 = vst.msk [vmem:[#allocation2 + $0x6] sm:$0x1] %vm174, %v363
      %372 = vst.msk [vmem:[#allocation2 + $0x1e] sm:$0x1] %vm174, %v365
      %373 = vst.msk [vmem:[#allocation2 + $0x36] sm:$0x1] %vm174, %v367
      %v374 = vld [vmem:[%s111] sm:$0x7]
      %v377 = vunpack.c.l.s4 1966171168
      %v378 = vunpack.c.0.s8 %v377
      %v379 = vlaneseq
      %v380 = vshrl.u32 %v379, 7
      %v381 = vsub.s32 %v378, %v380
      %v382 = vrot.slane %v374, %v381
      %v383 = vcombine.high %v382, %v382
      %v385 = vunpack.c.l.s4 1966171168
      %v386 = vunpack.c.0.s8 %v385
      %v387 = vlaneseq
      %v388 = vshrl.u32 %v387, 7
      %v389 = vsub.s32 %v386, %v388
      %v390 = vrot.slane %v382, %v389
      %v392 = vunpack.c.l.s4 1966171168
      %v393 = vunpack.c.0.s8 %v392
      %v394 = vlaneseq
      %v395 = vshrl.u32 %v394, 7
      %v396 = vsub.s32 %v393, %v395
      %v397 = vrot.slane %v383, %v396
      %v398 = vcombine.high %v390, %v390
      %v399 = vlaneseq
      %v400 = vshrl.u32 %v399, 7
      %v401 = vsub.s32 0, %v400
      %v402 = vrot.slane %v390, %v401
      %v403 = vlaneseq
      %v404 = vshrl.u32 %v403, 7
      %v405 = vsub.s32 0, %v404
      %v406 = vrot.slane %v397, %v405
      %v407 = vlaneseq
      %v408 = vshrl.u32 %v407, 7
      %v409 = vsub.s32 0, %v408
      %v410 = vrot.slane %v398, %v409
      %411 = vrot.lane.b32.xlu0 %v402, 50
      %v412 = vpop.permute.xlu0 %411
      %413 = vrot.lane.b32.xlu0 %v406, 50
      %v414 = vpop.permute.xlu0 %413
      %415 = vrot.lane.b32.xlu0 %v410, 50
      %v416 = vpop.permute.xlu0 %415
      %420 = vst.msk [vmem:[#allocation2 + $0x7] sm:$0x1] %vm174, %v412
      %421 = vst.msk [vmem:[#allocation2 + $0x1f] sm:$0x1] %vm174, %v414
      %422 = vst.msk [vmem:[#allocation2 + $0x37] sm:$0x1] %vm174, %v416
      %v423 = vld [vmem:[%s111] sm:$0x7]
      %v426 = vunpack.c.l.s4 1966171168
      %v427 = vunpack.c.0.s8 %v426
      %v428 = vlaneseq
      %v429 = vshrl.u32 %v428, 7
      %v430 = vsub.s32 %v427, %v429
      %v431 = vrot.slane %v423, %v430
      %v432 = vcombine.high %v431, %v431
      %v434 = vunpack.c.l.s4 1966171168
      %v435 = vunpack.c.0.s8 %v434
      %v436 = vlaneseq
      %v437 = vshrl.u32 %v436, 7
      %v438 = vsub.s32 %v435, %v437
      %v439 = vrot.slane %v431, %v438
      %v441 = vunpack.c.l.s4 1966171168
      %v442 = vunpack.c.0.s8 %v441
      %v443 = vlaneseq
      %v444 = vshrl.u32 %v443, 7
      %v445 = vsub.s32 %v442, %v444
      %v446 = vrot.slane %v432, %v445
      %v447 = vcombine.high %v439, %v439
      %v448 = vlaneseq
      %v449 = vshrl.u32 %v448, 7
      %v450 = vsub.s32 0, %v449
      %v451 = vrot.slane %v439, %v450
      %v452 = vlaneseq
      %v453 = vshrl.u32 %v452, 7
      %v454 = vsub.s32 0, %v453
      %v455 = vrot.slane %v446, %v454
      %v456 = vlaneseq
      %v457 = vshrl.u32 %v456, 7
      %v458 = vsub.s32 0, %v457
      %v459 = vrot.slane %v447, %v458
      %460 = vrot.lane.b32.xlu0 %v451, 34
      %v461 = vpop.permute.xlu0 %460
      %462 = vrot.lane.b32.xlu0 %v455, 34
      %v463 = vpop.permute.xlu0 %462
      %464 = vrot.lane.b32.xlu0 %v459, 34
      %v465 = vpop.permute.xlu0 %464
      %469 = vst.msk [vmem:[#allocation2 + $0x8] sm:$0x1] %vm174, %v461
      %470 = vst.msk [vmem:[#allocation2 + $0x20] sm:$0x1] %vm174, %v463
      %471 = vst.msk [vmem:[#allocation2 + $0x38] sm:$0x1] %vm174, %v465
      %v472 = vld [vmem:[%s111] sm:$0x7]
      %v475 = vunpack.c.l.s4 1966171168
      %v476 = vunpack.c.0.s8 %v475
      %v477 = vlaneseq
      %v478 = vshrl.u32 %v477, 7
      %v479 = vsub.s32 %v476, %v478
      %v480 = vrot.slane %v472, %v479
      %v481 = vcombine.high %v480, %v480
      %v483 = vunpack.c.l.s4 1966171168
      %v484 = vunpack.c.0.s8 %v483
      %v485 = vlaneseq
      %v486 = vshrl.u32 %v485, 7
      %v487 = vsub.s32 %v484, %v486
      %v488 = vrot.slane %v480, %v487
      %v490 = vunpack.c.l.s4 1966171168
      %v491 = vunpack.c.0.s8 %v490
      %v492 = vlaneseq
      %v493 = vshrl.u32 %v492, 7
      %v494 = vsub.s32 %v491, %v493
      %v495 = vrot.slane %v481, %v494
      %v496 = vcombine.high %v488, %v488
      %v497 = vlaneseq
      %v498 = vshrl.u32 %v497, 7
      %v499 = vsub.s32 0, %v498
      %v500 = vrot.slane %v488, %v499
      %v501 = vlaneseq
      %v502 = vshrl.u32 %v501, 7
      %v503 = vsub.s32 0, %v502
      %v504 = vrot.slane %v495, %v503
      %v505 = vlaneseq
      %v506 = vshrl.u32 %v505, 7
      %v507 = vsub.s32 0, %v506
      %v508 = vrot.slane %v496, %v507
      %509 = vrot.lane.b32.xlu0 %v500, 18
      %v510 = vpop.permute.xlu0 %509
      %511 = vrot.lane.b32.xlu0 %v504, 18
      %v512 = vpop.permute.xlu0 %511
      %513 = vrot.lane.b32.xlu0 %v508, 18
      %v514 = vpop.permute.xlu0 %513
      %518 = vst.msk [vmem:[#allocation2 + $0x9] sm:$0x1] %vm174, %v510
      %519 = vst.msk [vmem:[#allocation2 + $0x21] sm:$0x1] %vm174, %v512
      %520 = vst.msk [vmem:[#allocation2 + $0x39] sm:$0x1] %vm174, %v514
      %v521 = vld [vmem:[%s111 + $0x4] sm:$0x7]
      %v524 = vunpack.c.l.s4 1966171168
      %v525 = vunpack.c.0.s8 %v524
      %v526 = vlaneseq
      %v527 = vshrl.u32 %v526, 7
      %v528 = vsub.s32 %v525, %v527
      %v529 = vrot.slane %v521, %v528
      %v530 = vcombine.high %v529, %v529
      %v532 = vunpack.c.l.s4 1966171168
      %v533 = vunpack.c.0.s8 %v532
      %v534 = vlaneseq
      %v535 = vshrl.u32 %v534, 7
      %v536 = vsub.s32 %v533, %v535
      %v537 = vrot.slane %v529, %v536
      %v539 = vunpack.c.l.s4 1966171168
      %v540 = vunpack.c.0.s8 %v539
      %v541 = vlaneseq
      %v542 = vshrl.u32 %v541, 7
      %v543 = vsub.s32 %v540, %v542
      %v544 = vrot.slane %v530, %v543
      %v545 = vcombine.high %v537, %v537
      %v546 = vlaneseq
      %v547 = vshrl.u32 %v546, 7
      %v548 = vsub.s32 0, %v547
      %v549 = vrot.slane %v537, %v548
      %v550 = vlaneseq
      %v551 = vshrl.u32 %v550, 7
      %v552 = vsub.s32 0, %v551
      %v553 = vrot.slane %v544, %v552
      %v554 = vlaneseq
      %v555 = vshrl.u32 %v554, 7
      %v556 = vsub.s32 0, %v555
      %v557 = vrot.slane %v545, %v556
      %558 = vrot.lane.b32.xlu0 %v549, 2
      %v559 = vpop.permute.xlu0 %558
      %560 = vrot.lane.b32.xlu0 %v553, 2
      %v561 = vpop.permute.xlu0 %560
      %562 = vrot.lane.b32.xlu0 %v557, 2
      %v563 = vpop.permute.xlu0 %562
      %567 = vst.msk [vmem:[#allocation2 + $0xa] sm:$0x1] %vm174, %v559
      %568 = vst.msk [vmem:[#allocation2 + $0x22] sm:$0x1] %vm174, %v561
      %569 = vst.msk [vmem:[#allocation2 + $0x3a] sm:$0x1] %vm174, %v563
      %v570 = vld [vmem:[%s111 + $0x4] sm:$0x7]
      %v573 = vunpack.c.l.s4 1966171168
      %v574 = vunpack.c.0.s8 %v573
      %v575 = vlaneseq
      %v576 = vshrl.u32 %v575, 7
      %v577 = vsub.s32 %v574, %v576
      %v578 = vrot.slane %v570, %v577
      %v579 = vcombine.high %v578, %v578
      %v581 = vunpack.c.l.s4 1966171168
      %v582 = vunpack.c.0.s8 %v581
      %v583 = vlaneseq
      %v584 = vshrl.u32 %v583, 7
      %v585 = vsub.s32 %v582, %v584
      %v586 = vrot.slane %v578, %v585
      %v588 = vunpack.c.l.s4 1966171168
      %v589 = vunpack.c.0.s8 %v588
      %v590 = vlaneseq
      %v591 = vshrl.u32 %v590, 7
      %v592 = vsub.s32 %v589, %v591
      %v593 = vrot.slane %v579, %v592
      %v594 = vcombine.high %v586, %v586
      %v595 = vlaneseq
      %v596 = vshrl.u32 %v595, 7
      %v597 = vsub.s32 0, %v596
      %v598 = vrot.slane %v586, %v597
      %v599 = vlaneseq
      %v600 = vshrl.u32 %v599, 7
      %v601 = vsub.s32 0, %v600
      %v602 = vrot.slane %v593, %v601
      %v603 = vlaneseq
      %v604 = vshrl.u32 %v603, 7
      %v605 = vsub.s32 0, %v604
      %v606 = vrot.slane %v594, %v605
      %607 = vrot.lane.b32.xlu0 %v598, 114
      %v608 = vpop.permute.xlu0 %607
      %609 = vrot.lane.b32.xlu0 %v602, 114
      %v610 = vpop.permute.xlu0 %609
      %611 = vrot.lane.b32.xlu0 %v606, 114
      %v612 = vpop.permute.xlu0 %611
      %616 = vst.msk [vmem:[#allocation2 + $0xb] sm:$0x1] %vm174, %v608
      %617 = vst.msk [vmem:[#allocation2 + $0x23] sm:$0x1] %vm174, %v610
      %618 = vst.msk [vmem:[#allocation2 + $0x3b] sm:$0x1] %vm174, %v612
      %v619 = vld [vmem:[%s111 + $0x4] sm:$0x7]
      %v622 = vunpack.c.l.s4 1966171168
      %v623 = vunpack.c.0.s8 %v622
      %v624 = vlaneseq
      %v625 = vshrl.u32 %v624, 7
      %v626 = vsub.s32 %v623, %v625
      %v627 = vrot.slane %v619, %v626
      %v628 = vcombine.high %v627, %v627
      %v630 = vunpack.c.l.s4 1966171168
      %v631 = vunpack.c.0.s8 %v630
      %v632 = vlaneseq
      %v633 = vshrl.u32 %v632, 7
      %v634 = vsub.s32 %v631, %v633
      %v635 = vrot.slane %v627, %v634
      %v637 = vunpack.c.l.s4 1966171168
      %v638 = vunpack.c.0.s8 %v637
      %v639 = vlaneseq
      %v640 = vshrl.u32 %v639, 7
      %v641 = vsub.s32 %v638, %v640
      %v642 = vrot.slane %v628, %v641
      %v643 = vcombine.high %v635, %v635
      %v644 = vlaneseq
      %v645 = vshrl.u32 %v644, 7
      %v646 = vsub.s32 0, %v645
      %v647 = vrot.slane %v635, %v646
      %v648 = vlaneseq
      %v649 = vshrl.u32 %v648, 7
      %v650 = vsub.s32 0, %v649
      %v651 = vrot.slane %v642, %v650
      %v652 = vlaneseq
      %v653 = vshrl.u32 %v652, 7
      %v654 = vsub.s32 0, %v653
      %v655 = vrot.slane %v643, %v654
      %656 = vrot.lane.b32.xlu0 %v647, 98
      %v657 = vpop.permute.xlu0 %656
      %658 = vrot.lane.b32.xlu0 %v651, 98
      %v659 = vpop.permute.xlu0 %658
      %660 = vrot.lane.b32.xlu0 %v655, 98
      %v661 = vpop.permute.xlu0 %660
      %665 = vst.msk [vmem:[#allocation2 + $0xc] sm:$0x1] %vm174, %v657
      %666 = vst.msk [vmem:[#allocation2 + $0x24] sm:$0x1] %vm174, %v659
      %667 = vst.msk [vmem:[#allocation2 + $0x3c] sm:$0x1] %vm174, %v661
      %v668 = vld [vmem:[%s111 + $0x4] sm:$0x7]
      %v671 = vunpack.c.l.s4 1966171168
      %v672 = vunpack.c.0.s8 %v671
      %v673 = vlaneseq
      %v674 = vshrl.u32 %v673, 7
      %v675 = vsub.s32 %v672, %v674
      %v676 = vrot.slane %v668, %v675
      %v677 = vcombine.high %v676, %v676
      %v679 = vunpack.c.l.s4 1966171168
      %v680 = vunpack.c.0.s8 %v679
      %v681 = vlaneseq
      %v682 = vshrl.u32 %v681, 7
      %v683 = vsub.s32 %v680, %v682
      %v684 = vrot.slane %v676, %v683
      %v686 = vunpack.c.l.s4 1966171168
      %v687 = vunpack.c.0.s8 %v686
      %v688 = vlaneseq
      %v689 = vshrl.u32 %v688, 7
      %v690 = vsub.s32 %v687, %v689
      %v691 = vrot.slane %v677, %v690
      %v692 = vcombine.high %v684, %v684
      %v693 = vlaneseq
      %v694 = vshrl.u32 %v693, 7
      %v695 = vsub.s32 0, %v694
      %v696 = vrot.slane %v684, %v695
      %v697 = vlaneseq
      %v698 = vshrl.u32 %v697, 7
      %v699 = vsub.s32 0, %v698
      %v700 = vrot.slane %v691, %v699
      %v701 = vlaneseq
      %v702 = vshrl.u32 %v701, 7
      %v703 = vsub.s32 0, %v702
      %v704 = vrot.slane %v692, %v703
      %705 = vrot.lane.b32.xlu0 %v696, 82
      %v706 = vpop.permute.xlu0 %705
      %707 = vrot.lane.b32.xlu0 %v700, 82
      %v708 = vpop.permute.xlu0 %707
      %709 = vrot.lane.b32.xlu0 %v704, 82
      %v710 = vpop.permute.xlu0 %709
      %714 = vst.msk [vmem:[#allocation2 + $0xd] sm:$0x1] %vm174, %v706
      %715 = vst.msk [vmem:[#allocation2 + $0x25] sm:$0x1] %vm174, %v708
      %716 = vst.msk [vmem:[#allocation2 + $0x3d] sm:$0x1] %vm174, %v710
      %v717 = vld [vmem:[%s111 + $0x4] sm:$0x7]
      %v720 = vunpack.c.l.s4 1966171168
      %v721 = vunpack.c.0.s8 %v720
      %v722 = vlaneseq
      %v723 = vshrl.u32 %v722, 7
      %v724 = vsub.s32 %v721, %v723
      %v725 = vrot.slane %v717, %v724
      %v726 = vcombine.high %v725, %v725
      %v728 = vunpack.c.l.s4 1966171168
      %v729 = vunpack.c.0.s8 %v728
      %v730 = vlaneseq
      %v731 = vshrl.u32 %v730, 7
      %v732 = vsub.s32 %v729, %v731
      %v733 = vrot.slane %v725, %v732
      %v735 = vunpack.c.l.s4 1966171168
      %v736 = vunpack.c.0.s8 %v735
      %v737 = vlaneseq
      %v738 = vshrl.u32 %v737, 7
      %v739 = vsub.s32 %v736, %v738
      %v740 = vrot.slane %v726, %v739
      %v741 = vcombine.high %v733, %v733
      %v742 = vlaneseq
      %v743 = vshrl.u32 %v742, 7
      %v744 = vsub.s32 0, %v743
      %v745 = vrot.slane %v733, %v744
      %v746 = vlaneseq
      %v747 = vshrl.u32 %v746, 7
      %v748 = vsub.s32 0, %v747
      %v749 = vrot.slane %v740, %v748
      %v750 = vlaneseq
      %v751 = vshrl.u32 %v750, 7
      %v752 = vsub.s32 0, %v751
      %v753 = vrot.slane %v741, %v752
      %754 = vrot.lane.b32.xlu0 %v745, 66
      %v755 = vpop.permute.xlu0 %754
      %756 = vrot.lane.b32.xlu0 %v749, 66
      %v757 = vpop.permute.xlu0 %756
      %758 = vrot.lane.b32.xlu0 %v753, 66
      %v759 = vpop.permute.xlu0 %758
      %763 = vst.msk [vmem:[#allocation2 + $0xe] sm:$0x1] %vm174, %v755
      %764 = vst.msk [vmem:[#allocation2 + $0x26] sm:$0x1] %vm174, %v757
      %765 = vst.msk [vmem:[#allocation2 + $0x3e] sm:$0x1] %vm174, %v759
      %v766 = vld [vmem:[%s111 + $0x4] sm:$0x7]
      %v769 = vunpack.c.l.s4 1966171168
      %v770 = vunpack.c.0.s8 %v769
      %v771 = vlaneseq
      %v772 = vshrl.u32 %v771, 7
      %v773 = vsub.s32 %v770, %v772
      %v774 = vrot.slane %v766, %v773
      %v775 = vcombine.high %v774, %v774
      %v777 = vunpack.c.l.s4 1966171168
      %v778 = vunpack.c.0.s8 %v777
      %v779 = vlaneseq
      %v780 = vshrl.u32 %v779, 7
      %v781 = vsub.s32 %v778, %v780
      %v782 = vrot.slane %v774, %v781
      %v784 = vunpack.c.l.s4 1966171168
      %v785 = vunpack.c.0.s8 %v784
      %v786 = vlaneseq
      %v787 = vshrl.u32 %v786, 7
      %v788 = vsub.s32 %v785, %v787
      %v789 = vrot.slane %v775, %v788
      %v790 = vcombine.high %v782, %v782
      %v791 = vlaneseq
      %v792 = vshrl.u32 %v791, 7
      %v793 = vsub.s32 0, %v792
      %v794 = vrot.slane %v782, %v793
      %v795 = vlaneseq
      %v796 = vshrl.u32 %v795, 7
      %v797 = vsub.s32 0, %v796
      %v798 = vrot.slane %v789, %v797
      %v799 = vlaneseq
      %v800 = vshrl.u32 %v799, 7
      %v801 = vsub.s32 0, %v800
      %v802 = vrot.slane %v790, %v801
      %803 = vrot.lane.b32.xlu0 %v794, 50
      %v804 = vpop.permute.xlu0 %803
      %805 = vrot.lane.b32.xlu0 %v798, 50
      %v806 = vpop.permute.xlu0 %805
      %807 = vrot.lane.b32.xlu0 %v802, 50
      %v808 = vpop.permute.xlu0 %807
      %812 = vst.msk [vmem:[#allocation2 + $0xf] sm:$0x1] %vm174, %v804
      %813 = vst.msk [vmem:[#allocation2 + $0x27] sm:$0x1] %vm174, %v806
      %814 = vst.msk [vmem:[#allocation2 + $0x3f] sm:$0x1] %vm174, %v808
      %v815 = vld [vmem:[%s111 + $0x4] sm:$0x7]
      %v818 = vunpack.c.l.s4 1966171168
      %v819 = vunpack.c.0.s8 %v818
      %v820 = vlaneseq
      %v821 = vshrl.u32 %v820, 7
      %v822 = vsub.s32 %v819, %v821
      %v823 = vrot.slane %v815, %v822
      %v824 = vcombine.high %v823, %v823
      %v826 = vunpack.c.l.s4 1966171168
      %v827 = vunpack.c.0.s8 %v826
      %v828 = vlaneseq
      %v829 = vshrl.u32 %v828, 7
      %v830 = vsub.s32 %v827, %v829
      %v831 = vrot.slane %v823, %v830
      %v833 = vunpack.c.l.s4 1966171168
      %v834 = vunpack.c.0.s8 %v833
      %v835 = vlaneseq
      %v836 = vshrl.u32 %v835, 7
      %v837 = vsub.s32 %v834, %v836
      %v838 = vrot.slane %v824, %v837
      %v839 = vcombine.high %v831, %v831
      %v840 = vlaneseq
      %v841 = vshrl.u32 %v840, 7
      %v842 = vsub.s32 0, %v841
      %v843 = vrot.slane %v831, %v842
      %v844 = vlaneseq
      %v845 = vshrl.u32 %v844, 7
      %v846 = vsub.s32 0, %v845
      %v847 = vrot.slane %v838, %v846
      %v848 = vlaneseq
      %v849 = vshrl.u32 %v848, 7
      %v850 = vsub.s32 0, %v849
      %v851 = vrot.slane %v839, %v850
      %852 = vrot.lane.b32.xlu0 %v843, 34
      %v853 = vpop.permute.xlu0 %852
      %854 = vrot.lane.b32.xlu0 %v847, 34
      %v855 = vpop.permute.xlu0 %854
      %856 = vrot.lane.b32.xlu0 %v851, 34
      %v857 = vpop.permute.xlu0 %856
      %861 = vst.msk [vmem:[#allocation2 + $0x10] sm:$0x1] %vm174, %v853
      %862 = vst.msk [vmem:[#allocation2 + $0x28] sm:$0x1] %vm174, %v855
      %863 = vst.msk [vmem:[#allocation2 + $0x40] sm:$0x1] %vm174, %v857
      %v864 = vld [vmem:[%s111 + $0x4] sm:$0x7]
      %v867 = vunpack.c.l.s4 1966171168
      %v868 = vunpack.c.0.s8 %v867
      %v869 = vlaneseq
      %v870 = vshrl.u32 %v869, 7
      %v871 = vsub.s32 %v868, %v870
      %v872 = vrot.slane %v864, %v871
      %v873 = vcombine.high %v872, %v872
      %v875 = vunpack.c.l.s4 1966171168
      %v876 = vunpack.c.0.s8 %v875
      %v877 = vlaneseq
      %v878 = vshrl.u32 %v877, 7
      %v879 = vsub.s32 %v876, %v878
      %v880 = vrot.slane %v872, %v879
      %v882 = vunpack.c.l.s4 1966171168
      %v883 = vunpack.c.0.s8 %v882
      %v884 = vlaneseq
      %v885 = vshrl.u32 %v884, 7
      %v886 = vsub.s32 %v883, %v885
      %v887 = vrot.slane %v873, %v886
      %v888 = vcombine.high %v880, %v880
      %v889 = vlaneseq
      %v890 = vshrl.u32 %v889, 7
      %v891 = vsub.s32 0, %v890
      %v892 = vrot.slane %v880, %v891
      %v893 = vlaneseq
      %v894 = vshrl.u32 %v893, 7
      %v895 = vsub.s32 0, %v894
      %v896 = vrot.slane %v887, %v895
      %v897 = vlaneseq
      %v898 = vshrl.u32 %v897, 7
      %v899 = vsub.s32 0, %v898
      %v900 = vrot.slane %v888, %v899
      %901 = vrot.lane.b32.xlu0 %v892, 18
      %v902 = vpop.permute.xlu0 %901
      %903 = vrot.lane.b32.xlu0 %v896, 18
      %v904 = vpop.permute.xlu0 %903
      %905 = vrot.lane.b32.xlu0 %v900, 18
      %v906 = vpop.permute.xlu0 %905
      %910 = vst.msk [vmem:[#allocation2 + $0x11] sm:$0x1] %vm174, %v902
      %911 = vst.msk [vmem:[#allocation2 + $0x29] sm:$0x1] %vm174, %v904
      %912 = vst.msk [vmem:[#allocation2 + $0x41] sm:$0x1] %vm174, %v906
      %v913 = vld [vmem:[#allocation2] sm:$0xff]
      %v914 = vld [vmem:[#allocation2 + $0x8] sm:$0xff]
      %v915 = vld [vmem:[#allocation2 + $0x10] sm:$0xf]
      %v916 = vld [vmem:[#allocation2 + $0x18] sm:$0xff]
      %v917 = vld [vmem:[#allocation2 + $0x20] sm:$0xff]
      %v918 = vld [vmem:[#allocation2 + $0x28] sm:$0xf]
      %v919 = vld [vmem:[#allocation2 + $0x30] sm:$0xff]
      %v920 = vld [vmem:[#allocation2 + $0x38] sm:$0xff]
      %v921 = vld [vmem:[#allocation2 + $0x40] sm:$0xf]
      %931 = vrot.lane.b32.xlu0 %v913, 127
      %v932 = vpop.permute.xlu0 %931
      %933 = vrot.lane.b32.xlu0 %v914, 127
      %v934 = vpop.permute.xlu0 %933
      %935 = vrot.lane.b32.xlu0 %v915, 127
      %v936 = vpop.permute.xlu0 %935
      %937 = vrot.lane.b32.xlu0 %v916, 127
      %v938 = vpop.permute.xlu0 %937
      %939 = vrot.lane.b32.xlu0 %v917, 127
      %v940 = vpop.permute.xlu0 %939
      %941 = vrot.lane.b32.xlu0 %v918, 127
      %v942 = vpop.permute.xlu0 %941
      %943 = vrot.lane.b32.xlu0 %v919, 127
      %v944 = vpop.permute.xlu0 %943
      %945 = vrot.lane.b32.xlu0 %v920, 127
      %v946 = vpop.permute.xlu0 %945
      %947 = vrot.lane.b32.xlu0 %v921, 127
      %v948 = vpop.permute.xlu0 %947
      %v958 = vadd.f32 %v913, %v932
      %v959 = vadd.f32 %v914, %v934
      %v960 = vadd.f32 %v915, %v936
      %v961 = vadd.f32 %v916, %v938
      %v962 = vadd.f32 %v917, %v940
      %v963 = vadd.f32 %v918, %v942
      %v964 = vadd.f32 %v919, %v944
      %v965 = vadd.f32 %v920, %v946
      %v966 = vadd.f32 %v921, %v948
      %967 = vrot.lane.b32.xlu0 %v913, 126
      %v968 = vpop.permute.xlu0 %967
      %969 = vrot.lane.b32.xlu0 %v914, 126
      %v970 = vpop.permute.xlu0 %969
      %971 = vrot.lane.b32.xlu0 %v915, 126
      %v972 = vpop.permute.xlu0 %971
      %973 = vrot.lane.b32.xlu0 %v916, 126
      %v974 = vpop.permute.xlu0 %973
      %975 = vrot.lane.b32.xlu0 %v917, 126
      %v976 = vpop.permute.xlu0 %975
      %977 = vrot.lane.b32.xlu0 %v918, 126
      %v978 = vpop.permute.xlu0 %977
      %979 = vrot.lane.b32.xlu0 %v919, 126
      %v980 = vpop.permute.xlu0 %979
      %981 = vrot.lane.b32.xlu0 %v920, 126
      %v982 = vpop.permute.xlu0 %981
      %983 = vrot.lane.b32.xlu0 %v921, 126
      %v984 = vpop.permute.xlu0 %983
      %v994 = vadd.f32 %v958, %v968
      %v995 = vadd.f32 %v959, %v970
      %v996 = vadd.f32 %v960, %v972
      %v997 = vadd.f32 %v961, %v974
      %v998 = vadd.f32 %v962, %v976
      %v999 = vadd.f32 %v963, %v978
      %v1000 = vadd.f32 %v964, %v980
      %v1001 = vadd.f32 %v965, %v982
      %v1002 = vadd.f32 %v966, %v984
      %1003 = vrot.lane.b32.xlu0 %v913, 125
      %v1004 = vpop.permute.xlu0 %1003
      %1005 = vrot.lane.b32.xlu0 %v914, 125
      %v1006 = vpop.permute.xlu0 %1005
      %1007 = vrot.lane.b32.xlu0 %v915, 125
      %v1008 = vpop.permute.xlu0 %1007
      %1009 = vrot.lane.b32.xlu0 %v916, 125
      %v1010 = vpop.permute.xlu0 %1009
      %1011 = vrot.lane.b32.xlu0 %v917, 125
      %v1012 = vpop.permute.xlu0 %1011
      %1013 = vrot.lane.b32.xlu0 %v918, 125
      %v1014 = vpop.permute.xlu0 %1013
      %1015 = vrot.lane.b32.xlu0 %v919, 125
      %v1016 = vpop.permute.xlu0 %1015
      %1017 = vrot.lane.b32.xlu0 %v920, 125
      %v1018 = vpop.permute.xlu0 %1017
      %1019 = vrot.lane.b32.xlu0 %v921, 125
      %v1020 = vpop.permute.xlu0 %1019
      %v1030 = vadd.f32 %v994, %v1004
      %v1031 = vadd.f32 %v995, %v1006
      %v1032 = vadd.f32 %v996, %v1008
      %v1033 = vadd.f32 %v997, %v1010
      %v1034 = vadd.f32 %v998, %v1012
      %v1035 = vadd.f32 %v999, %v1014
      %v1036 = vadd.f32 %v1000, %v1016
      %v1037 = vadd.f32 %v1001, %v1018
      %v1038 = vadd.f32 %v1002, %v1020
      %1039 = vrot.lane.b32.xlu0 %v913, 124
      %v1040 = vpop.permute.xlu0 %1039
      %1041 = vrot.lane.b32.xlu0 %v914, 124
      %v1042 = vpop.permute.xlu0 %1041
      %1043 = vrot.lane.b32.xlu0 %v915, 124
      %v1044 = vpop.permute.xlu0 %1043
      %1045 = vrot.lane.b32.xlu0 %v916, 124
      %v1046 = vpop.permute.xlu0 %1045
      %1047 = vrot.lane.b32.xlu0 %v917, 124
      %v1048 = vpop.permute.xlu0 %1047
      %1049 = vrot.lane.b32.xlu0 %v918, 124
      %v1050 = vpop.permute.xlu0 %1049
      %1051 = vrot.lane.b32.xlu0 %v919, 124
      %v1052 = vpop.permute.xlu0 %1051
      %1053 = vrot.lane.b32.xlu0 %v920, 124
      %v1054 = vpop.permute.xlu0 %1053
      %1055 = vrot.lane.b32.xlu0 %v921, 124
      %v1056 = vpop.permute.xlu0 %1055
      %v1066 = vadd.f32 %v1030, %v1040
      %v1067 = vadd.f32 %v1031, %v1042
      %v1068 = vadd.f32 %v1032, %v1044
      %v1069 = vadd.f32 %v1033, %v1046
      %v1070 = vadd.f32 %v1034, %v1048
      %v1071 = vadd.f32 %v1035, %v1050
      %v1072 = vadd.f32 %v1036, %v1052
      %v1073 = vadd.f32 %v1037, %v1054
      %v1074 = vadd.f32 %v1038, %v1056
      %vm1084 = vcmask 1046528
      %v1085 = vrot.slane %v1066, 1
      %v1086 = vrot.slane %v1067, 1
      %v1087 = vsel %vm1084, %v1085, %v1086
      %v1088 = vrot.slane %v1068, 1
      %v1089 = vsel %vm1084, %v1086, %v1088
      %v1090 = vrot.slane %v1069, 1
      %v1091 = vrot.slane %v1070, 1
      %v1092 = vsel %vm1084, %v1090, %v1091
      %v1093 = vrot.slane %v1071, 1
      %v1094 = vsel %vm1084, %v1091, %v1093
      %v1095 = vrot.slane %v1072, 1
      %v1096 = vrot.slane %v1073, 1
      %v1097 = vsel %vm1084, %v1095, %v1096
      %v1098 = vrot.slane %v1074, 1
      %v1099 = vsel %vm1084, %v1096, %v1098
      %v1106 = vadd.f32 %v1066, %v1087
      %v1107 = vadd.f32 %v1067, %v1089
      %v1108 = vadd.f32 %v1069, %v1092
      %v1109 = vadd.f32 %v1070, %v1094
      %v1110 = vadd.f32 %v1072, %v1097
      %v1111 = vadd.f32 %v1073, %v1099
      %vm1112 = vcmask 1045504
      %v1113 = vrot.slane %v1066, 2
      %v1114 = vrot.slane %v1067, 2
      %v1115 = vsel %vm1112, %v1113, %v1114
      %v1116 = vrot.slane %v1068, 2
      %v1117 = vsel %vm1112, %v1114, %v1116
      %v1118 = vrot.slane %v1069, 2
      %v1119 = vrot.slane %v1070, 2
      %v1120 = vsel %vm1112, %v1118, %v1119
      %v1121 = vrot.slane %v1071, 2
      %v1122 = vsel %vm1112, %v1119, %v1121
      %v1123 = vrot.slane %v1072, 2
      %v1124 = vrot.slane %v1073, 2
      %v1125 = vsel %vm1112, %v1123, %v1124
      %v1126 = vrot.slane %v1074, 2
      %v1127 = vsel %vm1112, %v1124, %v1126
      %v1134 = vadd.f32 %v1106, %v1115
      %v1135 = vadd.f32 %v1107, %v1117
      %v1136 = vadd.f32 %v1108, %v1120
      %v1137 = vadd.f32 %v1109, %v1122
      %v1138 = vadd.f32 %v1110, %v1125
      %v1139 = vadd.f32 %v1111, %v1127
      %vm1140 = vcmask 1044480
      %v1141 = vrot.slane %v1066, 3
      %v1142 = vrot.slane %v1067, 3
      %v1143 = vsel %vm1140, %v1141, %v1142
      %v1144 = vrot.slane %v1068, 3
      %v1145 = vsel %vm1140, %v1142, %v1144
      %v1146 = vrot.slane %v1069, 3
      %v1147 = vrot.slane %v1070, 3
      %v1148 = vsel %vm1140, %v1146, %v1147
      %v1149 = vrot.slane %v1071, 3
      %v1150 = vsel %vm1140, %v1147, %v1149
      %v1151 = vrot.slane %v1072, 3
      %v1152 = vrot.slane %v1073, 3
      %v1153 = vsel %vm1140, %v1151, %v1152
      %v1154 = vrot.slane %v1074, 3
      %v1155 = vsel %vm1140, %v1152, %v1154
      %v1162 = vadd.f32 %v1134, %v1143
      %v1163 = vadd.f32 %v1135, %v1145
      %v1164 = vadd.f32 %v1136, %v1148
      %v1165 = vadd.f32 %v1137, %v1150
      %v1166 = vadd.f32 %v1138, %v1153
      %v1167 = vadd.f32 %v1139, %v1155
      %vm1168 = vcmask 1043456
      %v1169 = vrot.slane %v1066, 4
      %v1170 = vrot.slane %v1067, 4
      %v1171 = vsel %vm1168, %v1169, %v1170
      %v1172 = vrot.slane %v1068, 4
      %v1173 = vsel %vm1168, %v1170, %v1172
      %v1174 = vrot.slane %v1069, 4
      %v1175 = vrot.slane %v1070, 4
      %v1176 = vsel %vm1168, %v1174, %v1175
      %v1177 = vrot.slane %v1071, 4
      %v1178 = vsel %vm1168, %v1175, %v1177
      %v1179 = vrot.slane %v1072, 4
      %v1180 = vrot.slane %v1073, 4
      %v1181 = vsel %vm1168, %v1179, %v1180
      %v1182 = vrot.slane %v1074, 4
      %v1183 = vsel %vm1168, %v1180, %v1182
      %v1190 = vadd.f32 %v1162, %v1171
      %v1191 = vadd.f32 %v1163, %v1173
      %v1192 = vadd.f32 %v1164, %v1176
      %v1193 = vadd.f32 %v1165, %v1178
      %v1194 = vadd.f32 %v1166, %v1181
      %v1195 = vadd.f32 %v1167, %v1183
      %v1196 = vld [vmem:[#allocation2 + $0x2] sm:$0xff]
      %v1197 = vld [vmem:[#allocation2 + $0xa] sm:$0xff]
      %v1198 = vld [vmem:[#allocation2 + $0x1a] sm:$0xff]
      %v1199 = vld [vmem:[#allocation2 + $0x22] sm:$0xff]
      %v1200 = vld [vmem:[#allocation2 + $0x32] sm:$0xff]
      %v1201 = vld [vmem:[#allocation2 + $0x3a] sm:$0xff]
      %v1202 = vmul.f32 %v1196, 0.5
      %v1203 = vmul.f32 %v1197, 0.5
      %v1204 = vmul.f32 %v1198, 0.5
      %v1205 = vmul.f32 %v1199, 0.5
      %v1206 = vmul.f32 %v1200, 0.5
      %v1207 = vmul.f32 %v1201, 0.5
      %v1208 = vadd.f32 %v1202, 0.5
      %v1209 = vadd.f32 %v1203, 0.5
      %v1210 = vadd.f32 %v1204, 0.5
      %v1211 = vadd.f32 %v1205, 0.5
      %v1212 = vadd.f32 %v1206, 0.5
      %v1213 = vadd.f32 %v1207, 0.5
      %v1214 = vmul.f32 %v1190, 0.02
      %v1215 = vmul.f32 %v1191, 0.02
      %v1216 = vmul.f32 %v1192, 0.02
      %v1217 = vmul.f32 %v1193, 0.02
      %v1218 = vmul.f32 %v1194, 0.02
      %v1219 = vmul.f32 %v1195, 0.02
      %1226 = vrot.lane.b32.xlu0 %v1214, 2
      %v1227 = vpop.permute.xlu0 %1226
      %1228 = vrot.lane.b32.xlu0 %v1215, 2
      %v1229 = vpop.permute.xlu0 %1228
      %1230 = vrot.lane.b32.xlu0 %v1216, 2
      %v1231 = vpop.permute.xlu0 %1230
      %1232 = vrot.lane.b32.xlu0 %v1217, 2
      %v1233 = vpop.permute.xlu0 %1232
      %1234 = vrot.lane.b32.xlu0 %v1218, 2
      %v1235 = vpop.permute.xlu0 %1234
      %1236 = vrot.lane.b32.xlu0 %v1219, 2
      %v1237 = vpop.permute.xlu0 %1236
      %v1244 = vsub.f32 %v1208, %v1227
      %v1245 = vsub.f32 %v1209, %v1229
      %v1246 = vsub.f32 %v1210, %v1231
      %v1247 = vsub.f32 %v1211, %v1233
      %v1248 = vsub.f32 %v1212, %v1235
      %v1249 = vsub.f32 %v1213, %v1237
      %1256 = vrot.lane.b32.xlu0 %v1244, 126
      %v1257 = vpop.permute.xlu0 %1256
      %1258 = vrot.lane.b32.xlu0 %v1245, 126
      %v1259 = vpop.permute.xlu0 %1258
      %1260 = vrot.lane.b32.xlu0 %v1246, 126
      %v1261 = vpop.permute.xlu0 %1260
      %1262 = vrot.lane.b32.xlu0 %v1247, 126
      %v1263 = vpop.permute.xlu0 %1262
      %1264 = vrot.lane.b32.xlu0 %v1248, 126
      %v1265 = vpop.permute.xlu0 %1264
      %1266 = vrot.lane.b32.xlu0 %v1249, 126
      %v1267 = vpop.permute.xlu0 %1266
      %vm1274 = vcmask 130048
      %1275 = vst.msk [vmem:[#allocation3] sm:$0xff] %vm1274, %v1257
      %1276 = vst.msk [vmem:[#allocation3 + $0x8] sm:$0xff] %vm1274, %v1259
      %1277 = vst.msk [vmem:[#allocation3 + $0x10] sm:$0xff] %vm1274, %v1261
      %1278 = vst.msk [vmem:[#allocation3 + $0x18] sm:$0xff] %vm1274, %v1263
      %1279 = vst.msk [vmem:[#allocation3 + $0x20] sm:$0xff] %vm1274, %v1265
      %1280 = vst.msk [vmem:[#allocation3 + $0x28] sm:$0xff] %vm1274, %v1267
      %v1281 = vld [vmem:[#allocation3] sm:$0x1]
      %v1282 = vld [vmem:[#allocation3 + $0x10] sm:$0x1]
      %v1283 = vld [vmem:[#allocation3 + $0x20] sm:$0x1]
      %v1287 = vrot.slane %v1282, 7
      %vm1288 = vcmask 1041409
      %v1289 = vsel %vm1288, %v1287, %v1281
      %vm1290 = vcmask 1045509
      %v1291 = vsel %vm1290, %v1287, %v1289
      %v1292 = vrot.slane %v1283, 6
      %vm1293 = vcmask 1042434
      %v1294 = vsel %vm1293, %v1292, %v1291
      %vm1295 = vcmask 1046534
      %v1296 = vsel %vm1295, %v1292, %v1294
      %vm1298 = vcmask 124928
      %1299 = vst.msk [vmem:[%s116] sm:$0x7] %vm1298, %v1296
      %v1300 = vld [vmem:[#allocation3 + $0x1] sm:$0x1]
      %v1301 = vld [vmem:[#allocation3 + $0x11] sm:$0x1]
      %v1302 = vld [vmem:[#allocation3 + $0x21] sm:$0x1]
      %v1306 = vrot.slane %v1301, 7
      %v1307 = vsel %vm1288, %v1306, %v1300
      %v1308 = vsel %vm1290, %v1306, %v1307
      %v1309 = vrot.slane %v1302, 6
      %v1310 = vsel %vm1293, %v1309, %v1308
      %v1311 = vsel %vm1295, %v1309, %v1310
      %1312 = vrot.lane.b32.xlu0 %v1311, 16
      %v1313 = vpop.permute.xlu0 %1312
      %vm1315 = vcmask 256128
      %1316 = vst.msk [vmem:[%s116] sm:$0x7] %vm1315, %v1313
      %v1317 = vld [vmem:[#allocation3 + $0x2] sm:$0x1]
      %v1318 = vld [vmem:[#allocation3 + $0x12] sm:$0x1]
      %v1319 = vld [vmem:[#allocation3 + $0x22] sm:$0x1]
      %v1323 = vrot.slane %v1318, 7
      %v1324 = vsel %vm1288, %v1323, %v1317
      %v1325 = vsel %vm1290, %v1323, %v1324
      %v1326 = vrot.slane %v1319, 6
      %v1327 = vsel %vm1293, %v1326, %v1325
      %v1328 = vsel %vm1295, %v1326, %v1327
      %1329 = vrot.lane.b32.xlu0 %v1328, 32
      %v1330 = vpop.permute.xlu0 %1329
      %vm1332 = vcmask 387328
      %1333 = vst.msk [vmem:[%s116] sm:$0x7] %vm1332, %v1330
      %v1334 = vld [vmem:[#allocation3 + $0x3] sm:$0x1]
      %v1335 = vld [vmem:[#allocation3 + $0x13] sm:$0x1]
      %v1336 = vld [vmem:[#allocation3 + $0x23] sm:$0x1]
      %v1340 = vrot.slane %v1335, 7
      %v1341 = vsel %vm1288, %v1340, %v1334
      %v1342 = vsel %vm1290, %v1340, %v1341
      %v1343 = vrot.slane %v1336, 6
      %v1344 = vsel %vm1293, %v1343, %v1342
      %v1345 = vsel %vm1295, %v1343, %v1344
      %1346 = vrot.lane.b32.xlu0 %v1345, 48
      %v1347 = vpop.permute.xlu0 %1346
      %vm1349 = vcmask 518528
      %1350 = vst.msk [vmem:[%s116] sm:$0x7] %vm1349, %v1347
      %v1351 = vld [vmem:[#allocation3 + $0x4] sm:$0x1]
      %v1352 = vld [vmem:[#allocation3 + $0x14] sm:$0x1]
      %v1353 = vld [vmem:[#allocation3 + $0x24] sm:$0x1]
      %v1357 = vrot.slane %v1352, 7
      %v1358 = vsel %vm1288, %v1357, %v1351
      %v1359 = vsel %vm1290, %v1357, %v1358
      %v1360 = vrot.slane %v1353, 6
      %v1361 = vsel %vm1293, %v1360, %v1359
      %v1362 = vsel %vm1295, %v1360, %v1361
      %1363 = vrot.lane.b32.xlu0 %v1362, 64
      %v1364 = vpop.permute.xlu0 %1363
      %vm1366 = vcmask 649728
      %1367 = vst.msk [vmem:[%s116] sm:$0x7] %vm1366, %v1364
      %v1368 = vld [vmem:[#allocation3 + $0x5] sm:$0x1]
      %v1369 = vld [vmem:[#allocation3 + $0x15] sm:$0x1]
      %v1370 = vld [vmem:[#allocation3 + $0x25] sm:$0x1]
      %v1374 = vrot.slane %v1369, 7
      %v1375 = vsel %vm1288, %v1374, %v1368
      %v1376 = vsel %vm1290, %v1374, %v1375
      %v1377 = vrot.slane %v1370, 6
      %v1378 = vsel %vm1293, %v1377, %v1376
      %v1379 = vsel %vm1295, %v1377, %v1378
      %1380 = vrot.lane.b32.xlu0 %v1379, 80
      %v1381 = vpop.permute.xlu0 %1380
      %vm1383 = vcmask 780928
      %1384 = vst.msk [vmem:[%s116] sm:$0x7] %vm1383, %v1381
      %v1385 = vld [vmem:[#allocation3 + $0x6] sm:$0x1]
      %v1386 = vld [vmem:[#allocation3 + $0x16] sm:$0x1]
      %v1387 = vld [vmem:[#allocation3 + $0x26] sm:$0x1]
      %v1391 = vrot.slane %v1386, 7
      %v1392 = vsel %vm1288, %v1391, %v1385
      %v1393 = vsel %vm1290, %v1391, %v1392
      %v1394 = vrot.slane %v1387, 6
      %v1395 = vsel %vm1293, %v1394, %v1393
      %v1396 = vsel %vm1295, %v1394, %v1395
      %1397 = vrot.lane.b32.xlu0 %v1396, 96
      %v1398 = vpop.permute.xlu0 %1397
      %vm1400 = vcmask 912128
      %1401 = vst.msk [vmem:[%s116] sm:$0x7] %vm1400, %v1398
      %v1402 = vld [vmem:[#allocation3 + $0x7] sm:$0x1]
      %v1403 = vld [vmem:[#allocation3 + $0x17] sm:$0x1]
      %v1404 = vld [vmem:[#allocation3 + $0x27] sm:$0x1]
      %v1408 = vrot.slane %v1403, 7
      %v1409 = vsel %vm1288, %v1408, %v1402
      %v1410 = vsel %vm1290, %v1408, %v1409
      %v1411 = vrot.slane %v1404, 6
      %v1412 = vsel %vm1293, %v1411, %v1410
      %v1413 = vsel %vm1295, %v1411, %v1412
      %1414 = vrot.lane.b32.xlu0 %v1413, 112
      %v1415 = vpop.permute.xlu0 %1414
      %vm1417 = vcmask 1043328
      %1418 = vst.msk [vmem:[%s116] sm:$0x7] %vm1417, %v1415
      %v1419 = vld [vmem:[#allocation3 + $0x8] sm:$0x1]
      %v1420 = vld [vmem:[#allocation3 + $0x18] sm:$0x1]
      %v1421 = vld [vmem:[#allocation3 + $0x28] sm:$0x1]
      %v1425 = vrot.slane %v1420, 7
      %v1426 = vsel %vm1288, %v1425, %v1419
      %v1427 = vsel %vm1290, %v1425, %v1426
      %v1428 = vrot.slane %v1421, 6
      %v1429 = vsel %vm1293, %v1428, %v1427
      %v1430 = vsel %vm1295, %v1428, %v1429
      %1432 = vst.msk [vmem:[%s116 + $0x4] sm:$0x7] %vm1298, %v1430
      %v1433 = vld [vmem:[#allocation3 + $0x9] sm:$0x1]
      %v1434 = vld [vmem:[#allocation3 + $0x19] sm:$0x1]
      %v1435 = vld [vmem:[#allocation3 + $0x29] sm:$0x1]
      %v1439 = vrot.slane %v1434, 7
      %v1440 = vsel %vm1288, %v1439, %v1433
      %v1441 = vsel %vm1290, %v1439, %v1440
      %v1442 = vrot.slane %v1435, 6
      %v1443 = vsel %vm1293, %v1442, %v1441
      %v1444 = vsel %vm1295, %v1442, %v1443
      %1445 = vrot.lane.b32.xlu0 %v1444, 16
      %v1446 = vpop.permute.xlu0 %1445
      %1448 = vst.msk [vmem:[%s116 + $0x4] sm:$0x7] %vm1315, %v1446
      %v1449 = vld [vmem:[#allocation3 + $0xa] sm:$0x1]
      %v1450 = vld [vmem:[#allocation3 + $0x1a] sm:$0x1]
      %v1451 = vld [vmem:[#allocation3 + $0x2a] sm:$0x1]
      %v1455 = vrot.slane %v1450, 7
      %v1456 = vsel %vm1288, %v1455, %v1449
      %v1457 = vsel %vm1290, %v1455, %v1456
      %v1458 = vrot.slane %v1451, 6
      %v1459 = vsel %vm1293, %v1458, %v1457
      %v1460 = vsel %vm1295, %v1458, %v1459
      %1461 = vrot.lane.b32.xlu0 %v1460, 32
      %v1462 = vpop.permute.xlu0 %1461
      %1464 = vst.msk [vmem:[%s116 + $0x4] sm:$0x7] %vm1332, %v1462
      %v1465 = vld [vmem:[#allocation3 + $0xb] sm:$0x1]
      %v1466 = vld [vmem:[#allocation3 + $0x1b] sm:$0x1]
      %v1467 = vld [vmem:[#allocation3 + $0x2b] sm:$0x1]
      %v1471 = vrot.slane %v1466, 7
      %v1472 = vsel %vm1288, %v1471, %v1465
      %v1473 = vsel %vm1290, %v1471, %v1472
      %v1474 = vrot.slane %v1467, 6
      %v1475 = vsel %vm1293, %v1474, %v1473
      %v1476 = vsel %vm1295, %v1474, %v1475
      %1477 = vrot.lane.b32.xlu0 %v1476, 48
      %v1478 = vpop.permute.xlu0 %1477
      %1480 = vst.msk [vmem:[%s116 + $0x4] sm:$0x7] %vm1349, %v1478
      %v1481 = vld [vmem:[#allocation3 + $0xc] sm:$0x1]
      %v1482 = vld [vmem:[#allocation3 + $0x1c] sm:$0x1]
      %v1483 = vld [vmem:[#allocation3 + $0x2c] sm:$0x1]
      %v1487 = vrot.slane %v1482, 7
      %v1488 = vsel %vm1288, %v1487, %v1481
      %v1489 = vsel %vm1290, %v1487, %v1488
      %v1490 = vrot.slane %v1483, 6
      %v1491 = vsel %vm1293, %v1490, %v1489
      %v1492 = vsel %vm1295, %v1490, %v1491
      %1493 = vrot.lane.b32.xlu0 %v1492, 64
      %v1494 = vpop.permute.xlu0 %1493
      %1496 = vst.msk [vmem:[%s116 + $0x4] sm:$0x7] %vm1366, %v1494
      %v1497 = vld [vmem:[#allocation3 + $0xd] sm:$0x1]
      %v1498 = vld [vmem:[#allocation3 + $0x1d] sm:$0x1]
      %v1499 = vld [vmem:[#allocation3 + $0x2d] sm:$0x1]
      %v1503 = vrot.slane %v1498, 7
      %v1504 = vsel %vm1288, %v1503, %v1497
      %v1505 = vsel %vm1290, %v1503, %v1504
      %v1506 = vrot.slane %v1499, 6
      %v1507 = vsel %vm1293, %v1506, %v1505
      %v1508 = vsel %vm1295, %v1506, %v1507
      %1509 = vrot.lane.b32.xlu0 %v1508, 80
      %v1510 = vpop.permute.xlu0 %1509
      %1512 = vst.msk [vmem:[%s116 + $0x4] sm:$0x7] %vm1383, %v1510
      %v1513 = vld [vmem:[#allocation3 + $0xe] sm:$0x1]
      %v1514 = vld [vmem:[#allocation3 + $0x1e] sm:$0x1]
      %v1515 = vld [vmem:[#allocation3 + $0x2e] sm:$0x1]
      %v1519 = vrot.slane %v1514, 7
      %v1520 = vsel %vm1288, %v1519, %v1513
      %v1521 = vsel %vm1290, %v1519, %v1520
      %v1522 = vrot.slane %v1515, 6
      %v1523 = vsel %vm1293, %v1522, %v1521
      %v1524 = vsel %vm1295, %v1522, %v1523
      %1525 = vrot.lane.b32.xlu0 %v1524, 96
      %v1526 = vpop.permute.xlu0 %1525
      %1528 = vst.msk [vmem:[%s116 + $0x4] sm:$0x7] %vm1400, %v1526
      %v1529 = vld [vmem:[#allocation3 + $0xf] sm:$0x1]
      %v1530 = vld [vmem:[#allocation3 + $0x1f] sm:$0x1]
      %v1531 = vld [vmem:[#allocation3 + $0x2f] sm:$0x1]
      %v1535 = vrot.slane %v1530, 7
      %v1536 = vsel %vm1288, %v1535, %v1529
      %v1537 = vsel %vm1290, %v1535, %v1536
      %v1538 = vrot.slane %v1531, 6
      %v1539 = vsel %vm1293, %v1538, %v1537
      %v1540 = vsel %vm1295, %v1538, %v1539
      %1541 = vrot.lane.b32.xlu0 %v1540, 112
      %v1542 = vpop.permute.xlu0 %1541
      %1544 = vst.msk [vmem:[%s116 + $0x4] sm:$0x7] %vm1417, %v1542
      %p1545 = scmp.lt.s32.totalorder %s12, 1
      %s1546 = scalar_select %p1545, %s12, 1
      %s1547 = smul.addr %s1546, 2
      %s1548 = smul.addr %s1547, 4
      %s1549 = scalar_lea.vmem %s1, %s1548
      // Predicated region
      $region25: #{filter_high.1} parent=23 // pred_check
        %p1550 = pneg %p56
      $region26: #{filter_high.1} parent=23 // pred_check_branch
        %1552 = sbr.rel (%p1550) target = $region28
      $region27: #{filter_high.1} parent=23 // pred_region
        _
      $region28: #{filter_high.1} parent=23 // pred_fallthru
        _
    $region24: #{filter_high.1} parent=5 // pred_fallthru
      _
    %p1553 = scmp.le.s32.totalorder 2, %s7
    // Predicated region
    $region29: #{filter_high.1} parent=5 // pred_check
      %p1554 = pneg %p1553
    $region30: #{filter_high.1} parent=5 // pred_check_branch
      %1556 = sbr.rel (%p1554) target = $region32
    $region31: #{filter_high.1} parent=5 // pred_region
      %s1557 = ssub.s32 %s7, 2
      // Predicated region
      $region33: #{filter_high.1} parent=31 // pred_check
        %p1558 = pneg %p62
      $region34: #{filter_high.1} parent=31 // pred_check_branch
        %1560 = sbr.rel (%p1558) target = $region36
      $region35: #{filter_high.1} parent=31 // pred_region
        %p1561 = scmp.lt.s32.totalorder %s13, 1
        %s1562 = scalar_select %p1561, %s13, 1
        %s1563 = smul.addr %s1562, 2
        %s1564 = smul.addr %s1563, 4
        %s1565 = scalar_lea.vmem %s1, %s1564
      $region36: #{filter_high.1} parent=31 // pred_fallthru
        _
    $region32: #{filter_high.1} parent=5 // pred_fallthru
      _
  $region6: #{filter_high.1} parent=0 // loop_footer
    %s11 = sadd.s32 1, %s7
  $region7: #{filter_high.1} parent=0 // loop_footer_branch
    %6 = sbr.rel target = $region3
  $region8: #{filter_high.1} parent=0 // loop_exit
    _

</llo_original>
